<compile_context>
chip_gen: v6e
topology: v6e:2x2x1
jax: 0.10.0
libtpu: 0.0.40
codegen_flags: <defaults>
</compile_context>

<pallas_src>
import functools

import jax
import jax.numpy as jnp
from jax import lax
from jax.experimental import pallas as pl
from jax.experimental.pallas import tpu as pltpu

BN_EPS = 1e-5
LEAKY_SLOPE = 0.01  # torch default negative_slope for leaky_relu
LANE = 128


def _round_up(x, m):
    return (x + m - 1) // m * m


# ----------------------------- fused kernel --------------------------------

def _wave_resnet_kernel(x_ref, w_ref, v_ref, o_ref, *, planes):
    """Whole WaveResNET forward in one kernel.

    x_ref : (B, K_pad)              unpadded-ish input (K_pad = round_up(in, 8))
    w_ref : (n_layers, K_pad, 128)  (in, out)-layout weights, zero-padded
    v_ref : (2*n_bn + 1, 128)       rows [0:n_bn)=gamma, [n_bn:2n_bn)=beta,
                                    row 2*n_bn = final-fc bias
    o_ref : (B, 128)                lane-dense padded output of the final fc
    """
    n_layers = w_ref.shape[0]
    k_pad = w_ref.shape[1]
    n_bn = (v_ref.shape[0] - 1) // 2
    assert n_layers == n_bn + 1

    def linear_bn(h, idx, act):
        # Linear, NO bias: with training-mode BN right after, a per-feature bias
        # is exactly cancelled by the mean subtraction, so it is never packed.
        y = jnp.dot(h[:, :k_pad], w_ref[idx],
                    preferred_element_type=jnp.float32)
        # BatchNorm1d (training mode), single-pass stats: the two reductions are
        # independent and overlap in the XLU.  Biased variance, like PyTorch.
        # TODO(synk): running_mean/running_var buffers are not updated (forward only).
        mean = jnp.mean(y, axis=0, keepdims=True)
        mean_sq = jnp.mean(y * y, axis=0, keepdims=True)
        var = jnp.maximum(mean_sq - mean * mean, 0.0)      # clamp fp cancellation
        # gamma folded into the scale: one (1,128) mul instead of a (B,128) mul.
        scale = v_ref[idx:idx + 1, :] * lax.rsqrt(var + BN_EPS)
        y = (y - mean) * scale + v_ref[n_bn + idx:n_bn + idx + 1, :]
        if act:
            y = jnp.where(y >= 0.0, y, LEAKY_SLOPE * y)    # LeakyReLU
        return y

    h = x_ref[...]                       # (B, K_pad)
    idx = 0
    for stage in range(3):
        # down_sample = Linear -> BatchNorm1d (no activation)
        identity = linear_bn(h, idx, act=False)
        idx += 1
        # TODO(synk): the `block` class is not defined in the reference source;
        # assumed Linear -> BatchNorm1d -> LeakyReLU (matches the kaiming
        # leaky_relu init convention used in __init__).
        for _ in range(planes[stage]):
            h = linear_bn(h, idx, act=True)
            idx += 1
        h = h + identity                                   # x = layer(x) + identity
    # final fc: plain Linear with bias
    y = jnp.dot(h[:, :k_pad], w_ref[idx],
                preferred_element_type=jnp.float32) + v_ref[2 * n_bn:2 * n_bn + 1, :]
    o_ref[...] = y.astype(o_ref.dtype)


# ------------------------------ wrapper -------------------------------------

def wave_resnet_forward(packed, x, *, planes, out_nodes):
    """x: (B, in_nodes) f32 -> (B, out_nodes) f32."""
    w_packed, v_packed = packed
    k_pad = w_packed.shape[1]
    n_pad = w_packed.shape[2]
    B, in_f = x.shape
    if in_f < k_pad:                     # at most 7 extra lanes; 0 in the demo
        x = jnp.pad(x, ((0, 0), (0, k_pad - in_f)))

    kern = functools.partial(_wave_resnet_kernel, planes=tuple(planes))
    y = pl.pallas_call(
        kern,
        out_shape=jax.ShapeDtypeStruct((B, n_pad), jnp.float32),
        in_specs=[pl.BlockSpec(memory_space=pltpu.MemorySpace.VMEM)] * 3,
        out_specs=pl.BlockSpec(memory_space=pltpu.MemorySpace.VMEM),
    )(x, w_packed, v_packed)
    return y[:, :out_nodes]


# --------------------------- parameter init ---------------------------------

def _kaiming_normal_fan_out(key, out_f, in_f):
    # nn.init.kaiming_normal_(mode='fan_out', nonlinearity='leaky_relu')
    gain = (2.0 / (1.0 + LEAKY_SLOPE ** 2)) ** 0.5
    std = gain / (out_f ** 0.5)
    return std * jax.random.normal(key, (out_f, in_f), jnp.float32)


def _linear_bias(key, out_f, in_f):
    bound = 1.0 / (in_f ** 0.5)
    return jax.random.uniform(key, (out_f,), jnp.float32, -bound, bound)


def init_params(key, planes, nodes, out_nodes, in_nodes):
    keys = iter(jax.random.split(key, 256))

    def make_linear(out_f, in_f):
        return {"w": _kaiming_normal_fan_out(next(keys), out_f, in_f),
                "b": _linear_bias(next(keys), out_f, in_f)}

    def make_bn(n):
        return {"gamma": jnp.ones((n,), jnp.float32),
                "beta": jnp.zeros((n,), jnp.float32)}

    params = {}
    cur = in_nodes
    for li in range(3):
        n = nodes[li]
        params[f"down{li}"] = {"lin": make_linear(n, cur), "bn": make_bn(n)}
        blocks = []
        blk_in = cur
        for _ in range(planes[li]):
            blocks.append({"lin": make_linear(n, blk_in), "bn": make_bn(n)})
            blk_in = n
        params[f"layer{li}"] = blocks
        cur = n
    params["fin_fc"] = make_linear(out_nodes, cur)
    return params


def pack_params(params):
    """One-time layout: transpose to (in,out), pad K to round_up(max_in, 8),
    pad out to 128 lanes, stack.  Linear biases of BN-followed layers are NOT
    packed (mathematically cancelled by training-mode BN)."""
    bn_layers = []                       # (w, gamma, beta) in execution order
    for li in range(3):
        ds = params[f"down{li}"]
        bn_layers.append((ds["lin"]["w"], ds["bn"]["gamma"], ds["bn"]["beta"]))
        for blk in params[f"layer{li}"]:
            bn_layers.append((blk["lin"]["w"], blk["bn"]["gamma"], blk["bn"]["beta"]))
    fc_w = params["fin_fc"]["w"]
    fc_b = params["fin_fc"]["b"]

    n_bn = len(bn_layers)
    n_layers = n_bn + 1
    max_in = max([w.shape[1] for (w, _, _) in bn_layers] + [fc_w.shape[1]])
    k_pad = _round_up(max_in, 8)
    n_pad = LANE

    w_packed = jnp.zeros((n_layers, k_pad, n_pad), jnp.float32)
    v_packed = jnp.zeros((2 * n_bn + 1, n_pad), jnp.float32)
    for i, (w, g, be) in enumerate(bn_layers):
        out_f, in_f = w.shape
        w_packed = w_packed.at[i, :in_f, :out_f].set(w.T)
        v_packed = v_packed.at[i, :out_f].set(g)
        v_packed = v_packed.at[n_bn + i, :out_f].set(be)
    out_f, in_f = fc_w.shape
    w_packed = w_packed.at[n_bn, :in_f, :out_f].set(fc_w.T)
    v_packed = v_packed.at[2 * n_bn, :out_f].set(fc_b)
    return w_packed, v_packed


# --------------------------- pure-JAX reference ------------------------------

def wave_resnet_reference(params, x, *, planes):
    """Unfused reference with full semantics (biases kept, two-pass BN)."""
    def linear(p, h):
        return jnp.dot(h, p["w"].T, precision=lax.Precision.HIGHEST) + p["b"]

    def bn(p, h):
        mean = jnp.mean(h, axis=0, keepdims=True)
        var = jnp.mean((h - mean) ** 2, axis=0, keepdims=True)
        return (h - mean) * lax.rsqrt(var + BN_EPS) * p["gamma"] + p["beta"]

    def leaky(h):
        return jnp.where(h >= 0.0, h, LEAKY_SLOPE * h)

    h = x
    for li in range(3):
        ds = params[f"down{li}"]
        identity = bn(ds["bn"], linear(ds["lin"], h))
        for blk in params[f"layer{li}"]:
            h = leaky(bn(blk["bn"], linear(blk["lin"], h)))
        h = h + identity
    return linear(params["fin_fc"], h)


# -------------------------------- main ---------------------------------------

if __name__ == "__main__":
    B = 8
    in_nodes = 40
    nodes = [32, 24, 16]
    planes = [2, 2, 2]
    out_nodes = 5

    key = jax.random.PRNGKey(0)
    kp, kx = jax.random.split(key)
    params = init_params(kp, planes, nodes, out_nodes, in_nodes)
    packed = pack_params(params)          # done once, DMA-ready layout
    x = jax.random.normal(kx, (B, in_nodes), jnp.float32)

    fwd = jax.jit(functools.partial(wave_resnet_forward,
                                    planes=tuple(planes), out_nodes=out_nodes))
    y = fwd(packed, x)
    jax.block_until_ready(y)
    assert y.shape == (B, out_nodes) and y.dtype == jnp.float32

    y_ref = wave_resnet_reference(params, x, planes=tuple(planes))
    err = float(jnp.max(jnp.abs(y - y_ref)))
    assert err < 5e-2, f"kernel/reference mismatch: max abs err = {err}"
    print("KERNEL_OK")
</pallas_src>

<mosaic_0001>
module attributes {stable_mosaic.version = 11 : i64} {
  func.func @_wave_resnet_kernel(%arg0: memref<8x40xf32, #tpu.memory_space<vmem>>, %arg1: memref<10x40x128xf32, #tpu.memory_space<vmem>>, %arg2: memref<19x128xf32, #tpu.memory_space<vmem>>, %arg3: memref<8x128xf32, #tpu.memory_space<vmem>>) attributes {dimension_semantics = [], scalar_prefetch = 0 : i64, scratch_operands = 0 : i64, tpu.core_type = #tpu.core_type<tc>} {
    %c0 = arith.constant 0 : index
    %c0_0 = arith.constant 0 : index
    %0 = vector.load %arg0[%c0, %c0_0] : memref<8x40xf32, #tpu.memory_space<vmem>>, vector<8x40xf32>
    %c0_1 = arith.constant 0 : index
    %c0_2 = arith.constant 0 : index
    %c0_3 = arith.constant 0 : index
    %1 = vector.load %arg1[%c0_1, %c0_2, %c0_3] : memref<10x40x128xf32, #tpu.memory_space<vmem>>, vector<1x40x128xf32>
    %2 = vector.shape_cast %1 : vector<1x40x128xf32> to vector<40x128xf32>
    %cst = arith.constant dense<0.000000e+00> : vector<8x128xf32>
    %3 = tpu.matmul %0, %2, %cst {dimension_numbers = #tpu.dot_dimension_numbers<[1], [0], [0], [1], [0, 0, 1, 1], [], []>} : vector<8x40xf32>, vector<40x128xf32>, vector<8x128xf32> -> vector<8x128xf32>
    %cst_4 = arith.constant dense<0.000000e+00> : vector<128xf32>
    %4 = vector.multi_reduction <add>, %3, %cst_4 [0] : vector<8x128xf32> to vector<128xf32>
    %5 = vector.shape_cast %4 : vector<128xf32> to vector<1x128xf32>
    %cst_5 = arith.constant 8.000000e+00 : f32
    %6 = vector.broadcast %cst_5 : f32 to vector<1x128xf32>
    %7 = arith.divf %5, %6 : vector<1x128xf32>
    %8 = arith.mulf %3, %3 : vector<8x128xf32>
    %cst_6 = arith.constant dense<0.000000e+00> : vector<128xf32>
    %9 = vector.multi_reduction <add>, %8, %cst_6 [0] : vector<8x128xf32> to vector<128xf32>
    %10 = vector.shape_cast %9 : vector<128xf32> to vector<1x128xf32>
    %cst_7 = arith.constant 8.000000e+00 : f32
    %11 = vector.broadcast %cst_7 : f32 to vector<1x128xf32>
    %12 = arith.divf %10, %11 : vector<1x128xf32>
    %13 = arith.mulf %7, %7 : vector<1x128xf32>
    %14 = arith.subf %12, %13 : vector<1x128xf32>
    %cst_8 = arith.constant 0.000000e+00 : f32
    %15 = vector.broadcast %cst_8 : f32 to vector<1x128xf32>
    %16 = arith.maximumf %14, %15 : vector<1x128xf32>
    %c0_9 = arith.constant 0 : index
    %c0_10 = arith.constant 0 : index
    %17 = vector.load %arg2[%c0_9, %c0_10] : memref<19x128xf32, #tpu.memory_space<vmem>>, vector<1x128xf32>
    %cst_11 = arith.constant 9.99999974E-6 : f32
    %18 = vector.broadcast %cst_11 : f32 to vector<1x128xf32>
    %19 = arith.addf %16, %18 : vector<1x128xf32>
    %20 = math.rsqrt %19 : vector<1x128xf32>
    %21 = arith.mulf %17, %20 : vector<1x128xf32>
    %22 = vector.broadcast %7 : vector<1x128xf32> to vector<8x128xf32>
    %23 = arith.subf %3, %22 : vector<8x128xf32>
    %24 = vector.broadcast %21 : vector<1x128xf32> to vector<8x128xf32>
    %25 = arith.mulf %23, %24 : vector<8x128xf32>
    %c9 = arith.constant 9 : index
    %c0_12 = arith.constant 0 : index
    %26 = vector.load %arg2[%c9, %c0_12] : memref<19x128xf32, #tpu.memory_space<vmem>>, vector<1x128xf32>
    %27 = vector.broadcast %26 : vector<1x128xf32> to vector<8x128xf32>
    %28 = arith.addf %25, %27 : vector<8x128xf32>
    %c1 = arith.constant 1 : index
    %c0_13 = arith.constant 0 : index
    %c0_14 = arith.constant 0 : index
    %29 = vector.load %arg1[%c1, %c0_13, %c0_14] : memref<10x40x128xf32, #tpu.memory_space<vmem>>, vector<1x40x128xf32>
    %30 = vector.shape_cast %29 : vector<1x40x128xf32> to vector<40x128xf32>
    %cst_15 = arith.constant dense<0.000000e+00> : vector<8x128xf32>
    %31 = tpu.matmul %0, %30, %cst_15 {dimension_numbers = #tpu.dot_dimension_numbers<[1], [0], [0], [1], [0, 0, 1, 1], [], []>} : vector<8x40xf32>, vector<40x128xf32>, vector<8x128xf32> -> vector<8x128xf32>
    %cst_16 = arith.constant dense<0.000000e+00> : vector<128xf32>
    %32 = vector.multi_reduction <add>, %31, %cst_16 [0] : vector<8x128xf32> to vector<128xf32>
    %33 = vector.shape_cast %32 : vector<128xf32> to vector<1x128xf32>
    %cst_17 = arith.constant 8.000000e+00 : f32
    %34 = vector.broadcast %cst_17 : f32 to vector<1x128xf32>
    %35 = arith.divf %33, %34 : vector<1x128xf32>
    %36 = arith.mulf %31, %31 : vector<8x128xf32>
    %cst_18 = arith.constant dense<0.000000e+00> : vector<128xf32>
    %37 = vector.multi_reduction <add>, %36, %cst_18 [0] : vector<8x128xf32> to vector<128xf32>
    %38 = vector.shape_cast %37 : vector<128xf32> to vector<1x128xf32>
    %cst_19 = arith.constant 8.000000e+00 : f32
    %39 = vector.broadcast %cst_19 : f32 to vector<1x128xf32>
    %40 = arith.divf %38, %39 : vector<1x128xf32>
    %41 = arith.mulf %35, %35 : vector<1x128xf32>
    %42 = arith.subf %40, %41 : vector<1x128xf32>
    %cst_20 = arith.constant 0.000000e+00 : f32
    %43 = vector.broadcast %cst_20 : f32 to vector<1x128xf32>
    %44 = arith.maximumf %42, %43 : vector<1x128xf32>
    %c1_21 = arith.constant 1 : index
    %c0_22 = arith.constant 0 : index
    %45 = vector.load %arg2[%c1_21, %c0_22] : memref<19x128xf32, #tpu.memory_space<vmem>>, vector<1x128xf32>
    %cst_23 = arith.constant 9.99999974E-6 : f32
    %46 = vector.broadcast %cst_23 : f32 to vector<1x128xf32>
    %47 = arith.addf %44, %46 : vector<1x128xf32>
    %48 = math.rsqrt %47 : vector<1x128xf32>
    %49 = arith.mulf %45, %48 : vector<1x128xf32>
    %50 = vector.broadcast %35 : vector<1x128xf32> to vector<8x128xf32>
    %51 = arith.subf %31, %50 : vector<8x128xf32>
    %52 = vector.broadcast %49 : vector<1x128xf32> to vector<8x128xf32>
    %53 = arith.mulf %51, %52 : vector<8x128xf32>
    %c10 = arith.constant 10 : index
    %c0_24 = arith.constant 0 : index
    %54 = vector.load %arg2[%c10, %c0_24] : memref<19x128xf32, #tpu.memory_space<vmem>>, vector<1x128xf32>
    %55 = vector.broadcast %54 : vector<1x128xf32> to vector<8x128xf32>
    %56 = arith.addf %53, %55 : vector<8x128xf32>
    %cst_25 = arith.constant 0.000000e+00 : f32
    %57 = vector.broadcast %cst_25 : f32 to vector<8x128xf32>
    %58 = arith.cmpf oge, %56, %57 : vector<8x128xf32>
    %cst_26 = arith.constant 0.00999999977 : f32
    %59 = vector.broadcast %cst_26 : f32 to vector<8x128xf32>
    %60 = arith.mulf %59, %56 : vector<8x128xf32>
    %61 = arith.select %58, %56, %60 : vector<8x128xi1>, vector<8x128xf32>
    %62 = vector.extract_strided_slice %61 {offsets = [0, 0], sizes = [8, 40], strides = [1, 1]} : vector<8x128xf32> to vector<8x40xf32>
    %c2 = arith.constant 2 : index
    %c0_27 = arith.constant 0 : index
    %c0_28 = arith.constant 0 : index
    %63 = vector.load %arg1[%c2, %c0_27, %c0_28] : memref<10x40x128xf32, #tpu.memory_space<vmem>>, vector<1x40x128xf32>
    %64 = vector.shape_cast %63 : vector<1x40x128xf32> to vector<40x128xf32>
    %cst_29 = arith.constant dense<0.000000e+00> : vector<8x128xf32>
    %65 = tpu.matmul %62, %64, %cst_29 {dimension_numbers = #tpu.dot_dimension_numbers<[1], [0], [0], [1], [0, 0, 1, 1], [], []>} : vector<8x40xf32>, vector<40x128xf32>, vector<8x128xf32> -> vector<8x128xf32>
    %cst_30 = arith.constant dense<0.000000e+00> : vector<128xf32>
    %66 = vector.multi_reduction <add>, %65, %cst_30 [0] : vector<8x128xf32> to vector<128xf32>
    %67 = vector.shape_cast %66 : vector<128xf32> to vector<1x128xf32>
    %cst_31 = arith.constant 8.000000e+00 : f32
    %68 = vector.broadcast %cst_31 : f32 to vector<1x128xf32>
    %69 = arith.divf %67, %68 : vector<1x128xf32>
    %70 = arith.mulf %65, %65 : vector<8x128xf32>
    %cst_32 = arith.constant dense<0.000000e+00> : vector<128xf32>
    %71 = vector.multi_reduction <add>, %70, %cst_32 [0] : vector<8x128xf32> to vector<128xf32>
    %72 = vector.shape_cast %71 : vector<128xf32> to vector<1x128xf32>
    %cst_33 = arith.constant 8.000000e+00 : f32
    %73 = vector.broadcast %cst_33 : f32 to vector<1x128xf32>
    %74 = arith.divf %72, %73 : vector<1x128xf32>
    %75 = arith.mulf %69, %69 : vector<1x128xf32>
    %76 = arith.subf %74, %75 : vector<1x128xf32>
    %cst_34 = arith.constant 0.000000e+00 : f32
    %77 = vector.broadcast %cst_34 : f32 to vector<1x128xf32>
    %78 = arith.maximumf %76, %77 : vector<1x128xf32>
    %c2_35 = arith.constant 2 : index
    %c0_36 = arith.constant 0 : index
    %79 = vector.load %arg2[%c2_35, %c0_36] : memref<19x128xf32, #tpu.memory_space<vmem>>, vector<1x128xf32>
    %cst_37 = arith.constant 9.99999974E-6 : f32
    %80 = vector.broadcast %cst_37 : f32 to vector<1x128xf32>
    %81 = arith.addf %78, %80 : vector<1x128xf32>
    %82 = math.rsqrt %81 : vector<1x128xf32>
    %83 = arith.mulf %79, %82 : vector<1x128xf32>
    %84 = vector.broadcast %69 : vector<1x128xf32> to vector<8x128xf32>
    %85 = arith.subf %65, %84 : vector<8x128xf32>
    %86 = vector.broadcast %83 : vector<1x128xf32> to vector<8x128xf32>
    %87 = arith.mulf %85, %86 : vector<8x128xf32>
    %c11 = arith.constant 11 : index
    %c0_38 = arith.constant 0 : index
    %88 = vector.load %arg2[%c11, %c0_38] : memref<19x128xf32, #tpu.memory_space<vmem>>, vector<1x128xf32>
    %89 = vector.broadcast %88 : vector<1x128xf32> to vector<8x128xf32>
    %90 = arith.addf %87, %89 : vector<8x128xf32>
    %cst_39 = arith.constant 0.000000e+00 : f32
    %91 = vector.broadcast %cst_39 : f32 to vector<8x128xf32>
    %92 = arith.cmpf oge, %90, %91 : vector<8x128xf32>
    %cst_40 = arith.constant 0.00999999977 : f32
    %93 = vector.broadcast %cst_40 : f32 to vector<8x128xf32>
    %94 = arith.mulf %93, %90 : vector<8x128xf32>
    %95 = arith.select %92, %90, %94 : vector<8x128xi1>, vector<8x128xf32>
    %96 = arith.addf %95, %28 : vector<8x128xf32>
    %97 = vector.extract_strided_slice %96 {offsets = [0, 0], sizes = [8, 40], strides = [1, 1]} : vector<8x128xf32> to vector<8x40xf32>
    %c3 = arith.constant 3 : index
    %c0_41 = arith.constant 0 : index
    %c0_42 = arith.constant 0 : index
    %98 = vector.load %arg1[%c3, %c0_41, %c0_42] : memref<10x40x128xf32, #tpu.memory_space<vmem>>, vector<1x40x128xf32>
    %99 = vector.shape_cast %98 : vector<1x40x128xf32> to vector<40x128xf32>
    %cst_43 = arith.constant dense<0.000000e+00> : vector<8x128xf32>
    %100 = tpu.matmul %97, %99, %cst_43 {dimension_numbers = #tpu.dot_dimension_numbers<[1], [0], [0], [1], [0, 0, 1, 1], [], []>} : vector<8x40xf32>, vector<40x128xf32>, vector<8x128xf32> -> vector<8x128xf32>
    %cst_44 = arith.constant dense<0.000000e+00> : vector<128xf32>
    %101 = vector.multi_reduction <add>, %100, %cst_44 [0] : vector<8x128xf32> to vector<128xf32>
    %102 = vector.shape_cast %101 : vector<128xf32> to vector<1x128xf32>
    %cst_45 = arith.constant 8.000000e+00 : f32
    %103 = vector.broadcast %cst_45 : f32 to vector<1x128xf32>
    %104 = arith.divf %102, %103 : vector<1x128xf32>
    %105 = arith.mulf %100, %100 : vector<8x128xf32>
    %cst_46 = arith.constant dense<0.000000e+00> : vector<128xf32>
    %106 = vector.multi_reduction <add>, %105, %cst_46 [0] : vector<8x128xf32> to vector<128xf32>
    %107 = vector.shape_cast %106 : vector<128xf32> to vector<1x128xf32>
    %cst_47 = arith.constant 8.000000e+00 : f32
    %108 = vector.broadcast %cst_47 : f32 to vector<1x128xf32>
    %109 = arith.divf %107, %108 : vector<1x128xf32>
    %110 = arith.mulf %104, %104 : vector<1x128xf32>
    %111 = arith.subf %109, %110 : vector<1x128xf32>
    %cst_48 = arith.constant 0.000000e+00 : f32
    %112 = vector.broadcast %cst_48 : f32 to vector<1x128xf32>
    %113 = arith.maximumf %111, %112 : vector<1x128xf32>
    %c3_49 = arith.constant 3 : index
    %c0_50 = arith.constant 0 : index
    %114 = vector.load %arg2[%c3_49, %c0_50] : memref<19x128xf32, #tpu.memory_space<vmem>>, vector<1x128xf32>
    %cst_51 = arith.constant 9.99999974E-6 : f32
    %115 = vector.broadcast %cst_51 : f32 to vector<1x128xf32>
    %116 = arith.addf %113, %115 : vector<1x128xf32>
    %117 = math.rsqrt %116 : vector<1x128xf32>
    %118 = arith.mulf %114, %117 : vector<1x128xf32>
    %119 = vector.broadcast %104 : vector<1x128xf32> to vector<8x128xf32>
    %120 = arith.subf %100, %119 : vector<8x128xf32>
    %121 = vector.broadcast %118 : vector<1x128xf32> to vector<8x128xf32>
    %122 = arith.mulf %120, %121 : vector<8x128xf32>
    %c12 = arith.constant 12 : index
    %c0_52 = arith.constant 0 : index
    %123 = vector.load %arg2[%c12, %c0_52] : memref<19x128xf32, #tpu.memory_space<vmem>>, vector<1x128xf32>
    %124 = vector.broadcast %123 : vector<1x128xf32> to vector<8x128xf32>
    %125 = arith.addf %122, %124 : vector<8x128xf32>
    %126 = vector.extract_strided_slice %96 {offsets = [0, 0], sizes = [8, 40], strides = [1, 1]} : vector<8x128xf32> to vector<8x40xf32>
    %c4 = arith.constant 4 : index
    %c0_53 = arith.constant 0 : index
    %c0_54 = arith.constant 0 : index
    %127 = vector.load %arg1[%c4, %c0_53, %c0_54] : memref<10x40x128xf32, #tpu.memory_space<vmem>>, vector<1x40x128xf32>
    %128 = vector.shape_cast %127 : vector<1x40x128xf32> to vector<40x128xf32>
    %cst_55 = arith.constant dense<0.000000e+00> : vector<8x128xf32>
    %129 = tpu.matmul %126, %128, %cst_55 {dimension_numbers = #tpu.dot_dimension_numbers<[1], [0], [0], [1], [0, 0, 1, 1], [], []>} : vector<8x40xf32>, vector<40x128xf32>, vector<8x128xf32> -> vector<8x128xf32>
    %cst_56 = arith.constant dense<0.000000e+00> : vector<128xf32>
    %130 = vector.multi_reduction <add>, %129, %cst_56 [0] : vector<8x128xf32> to vector<128xf32>
    %131 = vector.shape_cast %130 : vector<128xf32> to vector<1x128xf32>
    %cst_57 = arith.constant 8.000000e+00 : f32
    %132 = vector.broadcast %cst_57 : f32 to vector<1x128xf32>
    %133 = arith.divf %131, %132 : vector<1x128xf32>
    %134 = arith.mulf %129, %129 : vector<8x128xf32>
    %cst_58 = arith.constant dense<0.000000e+00> : vector<128xf32>
    %135 = vector.multi_reduction <add>, %134, %cst_58 [0] : vector<8x128xf32> to vector<128xf32>
    %136 = vector.shape_cast %135 : vector<128xf32> to vector<1x128xf32>
    %cst_59 = arith.constant 8.000000e+00 : f32
    %137 = vector.broadcast %cst_59 : f32 to vector<1x128xf32>
    %138 = arith.divf %136, %137 : vector<1x128xf32>
    %139 = arith.mulf %133, %133 : vector<1x128xf32>
    %140 = arith.subf %138, %139 : vector<1x128xf32>
    %cst_60 = arith.constant 0.000000e+00 : f32
    %141 = vector.broadcast %cst_60 : f32 to vector<1x128xf32>
    %142 = arith.maximumf %140, %141 : vector<1x128xf32>
    %c4_61 = arith.constant 4 : index
    %c0_62 = arith.constant 0 : index
    %143 = vector.load %arg2[%c4_61, %c0_62] : memref<19x128xf32, #tpu.memory_space<vmem>>, vector<1x128xf32>
    %cst_63 = arith.constant 9.99999974E-6 : f32
    %144 = vector.broadcast %cst_63 : f32 to vector<1x128xf32>
    %145 = arith.addf %142, %144 : vector<1x128xf32>
    %146 = math.rsqrt %145 : vector<1x128xf32>
    %147 = arith.mulf %143, %146 : vector<1x128xf32>
    %148 = vector.broadcast %133 : vector<1x128xf32> to vector<8x128xf32>
    %149 = arith.subf %129, %148 : vector<8x128xf32>
    %150 = vector.broadcast %147 : vector<1x128xf32> to vector<8x128xf32>
    %151 = arith.mulf %149, %150 : vector<8x128xf32>
    %c13 = arith.constant 13 : index
    %c0_64 = arith.constant 0 : index
    %152 = vector.load %arg2[%c13, %c0_64] : memref<19x128xf32, #tpu.memory_space<vmem>>, vector<1x128xf32>
    %153 = vector.broadcast %152 : vector<1x128xf32> to vector<8x128xf32>
    %154 = arith.addf %151, %153 : vector<8x128xf32>
    %cst_65 = arith.constant 0.000000e+00 : f32
    %155 = vector.broadcast %cst_65 : f32 to vector<8x128xf32>
    %156 = arith.cmpf oge, %154, %155 : vector<8x128xf32>
    %cst_66 = arith.constant 0.00999999977 : f32
    %157 = vector.broadcast %cst_66 : f32 to vector<8x128xf32>
    %158 = arith.mulf %157, %154 : vector<8x128xf32>
    %159 = arith.select %156, %154, %158 : vector<8x128xi1>, vector<8x128xf32>
    %160 = vector.extract_strided_slice %159 {offsets = [0, 0], sizes = [8, 40], strides = [1, 1]} : vector<8x128xf32> to vector<8x40xf32>
    %c5 = arith.constant 5 : index
    %c0_67 = arith.constant 0 : index
    %c0_68 = arith.constant 0 : index
    %161 = vector.load %arg1[%c5, %c0_67, %c0_68] : memref<10x40x128xf32, #tpu.memory_space<vmem>>, vector<1x40x128xf32>
    %162 = vector.shape_cast %161 : vector<1x40x128xf32> to vector<40x128xf32>
    %cst_69 = arith.constant dense<0.000000e+00> : vector<8x128xf32>
    %163 = tpu.matmul %160, %162, %cst_69 {dimension_numbers = #tpu.dot_dimension_numbers<[1], [0], [0], [1], [0, 0, 1, 1], [], []>} : vector<8x40xf32>, vector<40x128xf32>, vector<8x128xf32> -> vector<8x128xf32>
    %cst_70 = arith.constant dense<0.000000e+00> : vector<128xf32>
    %164 = vector.multi_reduction <add>, %163, %cst_70 [0] : vector<8x128xf32> to vector<128xf32>
    %165 = vector.shape_cast %164 : vector<128xf32> to vector<1x128xf32>
    %cst_71 = arith.constant 8.000000e+00 : f32
    %166 = vector.broadcast %cst_71 : f32 to vector<1x128xf32>
    %167 = arith.divf %165, %166 : vector<1x128xf32>
    %168 = arith.mulf %163, %163 : vector<8x128xf32>
    %cst_72 = arith.constant dense<0.000000e+00> : vector<128xf32>
    %169 = vector.multi_reduction <add>, %168, %cst_72 [0] : vector<8x128xf32> to vector<128xf32>
    %170 = vector.shape_cast %169 : vector<128xf32> to vector<1x128xf32>
    %cst_73 = arith.constant 8.000000e+00 : f32
    %171 = vector.broadcast %cst_73 : f32 to vector<1x128xf32>
    %172 = arith.divf %170, %171 : vector<1x128xf32>
    %173 = arith.mulf %167, %167 : vector<1x128xf32>
    %174 = arith.subf %172, %173 : vector<1x128xf32>
    %cst_74 = arith.constant 0.000000e+00 : f32
    %175 = vector.broadcast %cst_74 : f32 to vector<1x128xf32>
    %176 = arith.maximumf %174, %175 : vector<1x128xf32>
    %c5_75 = arith.constant 5 : index
    %c0_76 = arith.constant 0 : index
    %177 = vector.load %arg2[%c5_75, %c0_76] : memref<19x128xf32, #tpu.memory_space<vmem>>, vector<1x128xf32>
    %cst_77 = arith.constant 9.99999974E-6 : f32
    %178 = vector.broadcast %cst_77 : f32 to vector<1x128xf32>
    %179 = arith.addf %176, %178 : vector<1x128xf32>
    %180 = math.rsqrt %179 : vector<1x128xf32>
    %181 = arith.mulf %177, %180 : vector<1x128xf32>
    %182 = vector.broadcast %167 : vector<1x128xf32> to vector<8x128xf32>
    %183 = arith.subf %163, %182 : vector<8x128xf32>
    %184 = vector.broadcast %181 : vector<1x128xf32> to vector<8x128xf32>
    %185 = arith.mulf %183, %184 : vector<8x128xf32>
    %c14 = arith.constant 14 : index
    %c0_78 = arith.constant 0 : index
    %186 = vector.load %arg2[%c14, %c0_78] : memref<19x128xf32, #tpu.memory_space<vmem>>, vector<1x128xf32>
    %187 = vector.broadcast %186 : vector<1x128xf32> to vector<8x128xf32>
    %188 = arith.addf %185, %187 : vector<8x128xf32>
    %cst_79 = arith.constant 0.000000e+00 : f32
    %189 = vector.broadcast %cst_79 : f32 to vector<8x128xf32>
    %190 = arith.cmpf oge, %188, %189 : vector<8x128xf32>
    %cst_80 = arith.constant 0.00999999977 : f32
    %191 = vector.broadcast %cst_80 : f32 to vector<8x128xf32>
    %192 = arith.mulf %191, %188 : vector<8x128xf32>
    %193 = arith.select %190, %188, %192 : vector<8x128xi1>, vector<8x128xf32>
    %194 = arith.addf %193, %125 : vector<8x128xf32>
    %195 = vector.extract_strided_slice %194 {offsets = [0, 0], sizes = [8, 40], strides = [1, 1]} : vector<8x128xf32> to vector<8x40xf32>
    %c6 = arith.constant 6 : index
    %c0_81 = arith.constant 0 : index
    %c0_82 = arith.constant 0 : index
    %196 = vector.load %arg1[%c6, %c0_81, %c0_82] : memref<10x40x128xf32, #tpu.memory_space<vmem>>, vector<1x40x128xf32>
    %197 = vector.shape_cast %196 : vector<1x40x128xf32> to vector<40x128xf32>
    %cst_83 = arith.constant dense<0.000000e+00> : vector<8x128xf32>
    %198 = tpu.matmul %195, %197, %cst_83 {dimension_numbers = #tpu.dot_dimension_numbers<[1], [0], [0], [1], [0, 0, 1, 1], [], []>} : vector<8x40xf32>, vector<40x128xf32>, vector<8x128xf32> -> vector<8x128xf32>
    %cst_84 = arith.constant dense<0.000000e+00> : vector<128xf32>
    %199 = vector.multi_reduction <add>, %198, %cst_84 [0] : vector<8x128xf32> to vector<128xf32>
    %200 = vector.shape_cast %199 : vector<128xf32> to vector<1x128xf32>
    %cst_85 = arith.constant 8.000000e+00 : f32
    %201 = vector.broadcast %cst_85 : f32 to vector<1x128xf32>
    %202 = arith.divf %200, %201 : vector<1x128xf32>
    %203 = arith.mulf %198, %198 : vector<8x128xf32>
    %cst_86 = arith.constant dense<0.000000e+00> : vector<128xf32>
    %204 = vector.multi_reduction <add>, %203, %cst_86 [0] : vector<8x128xf32> to vector<128xf32>
    %205 = vector.shape_cast %204 : vector<128xf32> to vector<1x128xf32>
    %cst_87 = arith.constant 8.000000e+00 : f32
    %206 = vector.broadcast %cst_87 : f32 to vector<1x128xf32>
    %207 = arith.divf %205, %206 : vector<1x128xf32>
    %208 = arith.mulf %202, %202 : vector<1x128xf32>
    %209 = arith.subf %207, %208 : vector<1x128xf32>
    %cst_88 = arith.constant 0.000000e+00 : f32
    %210 = vector.broadcast %cst_88 : f32 to vector<1x128xf32>
    %211 = arith.maximumf %209, %210 : vector<1x128xf32>
    %c6_89 = arith.constant 6 : index
    %c0_90 = arith.constant 0 : index
    %212 = vector.load %arg2[%c6_89, %c0_90] : memref<19x128xf32, #tpu.memory_space<vmem>>, vector<1x128xf32>
    %cst_91 = arith.constant 9.99999974E-6 : f32
    %213 = vector.broadcast %cst_91 : f32 to vector<1x128xf32>
    %214 = arith.addf %211, %213 : vector<1x128xf32>
    %215 = math.rsqrt %214 : vector<1x128xf32>
    %216 = arith.mulf %212, %215 : vector<1x128xf32>
    %217 = vector.broadcast %202 : vector<1x128xf32> to vector<8x128xf32>
    %218 = arith.subf %198, %217 : vector<8x128xf32>
    %219 = vector.broadcast %216 : vector<1x128xf32> to vector<8x128xf32>
    %220 = arith.mulf %218, %219 : vector<8x128xf32>
    %c15 = arith.constant 15 : index
    %c0_92 = arith.constant 0 : index
    %221 = vector.load %arg2[%c15, %c0_92] : memref<19x128xf32, #tpu.memory_space<vmem>>, vector<1x128xf32>
    %222 = vector.broadcast %221 : vector<1x128xf32> to vector<8x128xf32>
    %223 = arith.addf %220, %222 : vector<8x128xf32>
    %224 = vector.extract_strided_slice %194 {offsets = [0, 0], sizes = [8, 40], strides = [1, 1]} : vector<8x128xf32> to vector<8x40xf32>
    %c7 = arith.constant 7 : index
    %c0_93 = arith.constant 0 : index
    %c0_94 = arith.constant 0 : index
    %225 = vector.load %arg1[%c7, %c0_93, %c0_94] : memref<10x40x128xf32, #tpu.memory_space<vmem>>, vector<1x40x128xf32>
    %226 = vector.shape_cast %225 : vector<1x40x128xf32> to vector<40x128xf32>
    %cst_95 = arith.constant dense<0.000000e+00> : vector<8x128xf32>
    %227 = tpu.matmul %224, %226, %cst_95 {dimension_numbers = #tpu.dot_dimension_numbers<[1], [0], [0], [1], [0, 0, 1, 1], [], []>} : vector<8x40xf32>, vector<40x128xf32>, vector<8x128xf32> -> vector<8x128xf32>
    %cst_96 = arith.constant dense<0.000000e+00> : vector<128xf32>
    %228 = vector.multi_reduction <add>, %227, %cst_96 [0] : vector<8x128xf32> to vector<128xf32>
    %229 = vector.shape_cast %228 : vector<128xf32> to vector<1x128xf32>
    %cst_97 = arith.constant 8.000000e+00 : f32
    %230 = vector.broadcast %cst_97 : f32 to vector<1x128xf32>
    %231 = arith.divf %229, %230 : vector<1x128xf32>
    %232 = arith.mulf %227, %227 : vector<8x128xf32>
    %cst_98 = arith.constant dense<0.000000e+00> : vector<128xf32>
    %233 = vector.multi_reduction <add>, %232, %cst_98 [0] : vector<8x128xf32> to vector<128xf32>
    %234 = vector.shape_cast %233 : vector<128xf32> to vector<1x128xf32>
    %cst_99 = arith.constant 8.000000e+00 : f32
    %235 = vector.broadcast %cst_99 : f32 to vector<1x128xf32>
    %236 = arith.divf %234, %235 : vector<1x128xf32>
    %237 = arith.mulf %231, %231 : vector<1x128xf32>
    %238 = arith.subf %236, %237 : vector<1x128xf32>
    %cst_100 = arith.constant 0.000000e+00 : f32
    %239 = vector.broadcast %cst_100 : f32 to vector<1x128xf32>
    %240 = arith.maximumf %238, %239 : vector<1x128xf32>
    %c7_101 = arith.constant 7 : index
    %c0_102 = arith.constant 0 : index
    %241 = vector.load %arg2[%c7_101, %c0_102] : memref<19x128xf32, #tpu.memory_space<vmem>>, vector<1x128xf32>
    %cst_103 = arith.constant 9.99999974E-6 : f32
    %242 = vector.broadcast %cst_103 : f32 to vector<1x128xf32>
    %243 = arith.addf %240, %242 : vector<1x128xf32>
    %244 = math.rsqrt %243 : vector<1x128xf32>
    %245 = arith.mulf %241, %244 : vector<1x128xf32>
    %246 = vector.broadcast %231 : vector<1x128xf32> to vector<8x128xf32>
    %247 = arith.subf %227, %246 : vector<8x128xf32>
    %248 = vector.broadcast %245 : vector<1x128xf32> to vector<8x128xf32>
    %249 = arith.mulf %247, %248 : vector<8x128xf32>
    %c16 = arith.constant 16 : index
    %c0_104 = arith.constant 0 : index
    %250 = vector.load %arg2[%c16, %c0_104] : memref<19x128xf32, #tpu.memory_space<vmem>>, vector<1x128xf32>
    %251 = vector.broadcast %250 : vector<1x128xf32> to vector<8x128xf32>
    %252 = arith.addf %249, %251 : vector<8x128xf32>
    %cst_105 = arith.constant 0.000000e+00 : f32
    %253 = vector.broadcast %cst_105 : f32 to vector<8x128xf32>
    %254 = arith.cmpf oge, %252, %253 : vector<8x128xf32>
    %cst_106 = arith.constant 0.00999999977 : f32
    %255 = vector.broadcast %cst_106 : f32 to vector<8x128xf32>
    %256 = arith.mulf %255, %252 : vector<8x128xf32>
    %257 = arith.select %254, %252, %256 : vector<8x128xi1>, vector<8x128xf32>
    %258 = vector.extract_strided_slice %257 {offsets = [0, 0], sizes = [8, 40], strides = [1, 1]} : vector<8x128xf32> to vector<8x40xf32>
    %c8 = arith.constant 8 : index
    %c0_107 = arith.constant 0 : index
    %c0_108 = arith.constant 0 : index
    %259 = vector.load %arg1[%c8, %c0_107, %c0_108] : memref<10x40x128xf32, #tpu.memory_space<vmem>>, vector<1x40x128xf32>
    %260 = vector.shape_cast %259 : vector<1x40x128xf32> to vector<40x128xf32>
    %cst_109 = arith.constant dense<0.000000e+00> : vector<8x128xf32>
    %261 = tpu.matmul %258, %260, %cst_109 {dimension_numbers = #tpu.dot_dimension_numbers<[1], [0], [0], [1], [0, 0, 1, 1], [], []>} : vector<8x40xf32>, vector<40x128xf32>, vector<8x128xf32> -> vector<8x128xf32>
    %cst_110 = arith.constant dense<0.000000e+00> : vector<128xf32>
    %262 = vector.multi_reduction <add>, %261, %cst_110 [0] : vector<8x128xf32> to vector<128xf32>
    %263 = vector.shape_cast %262 : vector<128xf32> to vector<1x128xf32>
    %cst_111 = arith.constant 8.000000e+00 : f32
    %264 = vector.broadcast %cst_111 : f32 to vector<1x128xf32>
    %265 = arith.divf %263, %264 : vector<1x128xf32>
    %266 = arith.mulf %261, %261 : vector<8x128xf32>
    %cst_112 = arith.constant dense<0.000000e+00> : vector<128xf32>
    %267 = vector.multi_reduction <add>, %266, %cst_112 [0] : vector<8x128xf32> to vector<128xf32>
    %268 = vector.shape_cast %267 : vector<128xf32> to vector<1x128xf32>
    %cst_113 = arith.constant 8.000000e+00 : f32
    %269 = vector.broadcast %cst_113 : f32 to vector<1x128xf32>
    %270 = arith.divf %268, %269 : vector<1x128xf32>
    %271 = arith.mulf %265, %265 : vector<1x128xf32>
    %272 = arith.subf %270, %271 : vector<1x128xf32>
    %cst_114 = arith.constant 0.000000e+00 : f32
    %273 = vector.broadcast %cst_114 : f32 to vector<1x128xf32>
    %274 = arith.maximumf %272, %273 : vector<1x128xf32>
    %c8_115 = arith.constant 8 : index
    %c0_116 = arith.constant 0 : index
    %275 = vector.load %arg2[%c8_115, %c0_116] : memref<19x128xf32, #tpu.memory_space<vmem>>, vector<1x128xf32>
    %cst_117 = arith.constant 9.99999974E-6 : f32
    %276 = vector.broadcast %cst_117 : f32 to vector<1x128xf32>
    %277 = arith.addf %274, %276 : vector<1x128xf32>
    %278 = math.rsqrt %277 : vector<1x128xf32>
    %279 = arith.mulf %275, %278 : vector<1x128xf32>
    %280 = vector.broadcast %265 : vector<1x128xf32> to vector<8x128xf32>
    %281 = arith.subf %261, %280 : vector<8x128xf32>
    %282 = vector.broadcast %279 : vector<1x128xf32> to vector<8x128xf32>
    %283 = arith.mulf %281, %282 : vector<8x128xf32>
    %c17 = arith.constant 17 : index
    %c0_118 = arith.constant 0 : index
    %284 = vector.load %arg2[%c17, %c0_118] : memref<19x128xf32, #tpu.memory_space<vmem>>, vector<1x128xf32>
    %285 = vector.broadcast %284 : vector<1x128xf32> to vector<8x128xf32>
    %286 = arith.addf %283, %285 : vector<8x128xf32>
    %cst_119 = arith.constant 0.000000e+00 : f32
    %287 = vector.broadcast %cst_119 : f32 to vector<8x128xf32>
    %288 = arith.cmpf oge, %286, %287 : vector<8x128xf32>
    %cst_120 = arith.constant 0.00999999977 : f32
    %289 = vector.broadcast %cst_120 : f32 to vector<8x128xf32>
    %290 = arith.mulf %289, %286 : vector<8x128xf32>
    %291 = arith.select %288, %286, %290 : vector<8x128xi1>, vector<8x128xf32>
    %292 = arith.addf %291, %223 : vector<8x128xf32>
    %293 = vector.extract_strided_slice %292 {offsets = [0, 0], sizes = [8, 40], strides = [1, 1]} : vector<8x128xf32> to vector<8x40xf32>
    %c9_121 = arith.constant 9 : index
    %c0_122 = arith.constant 0 : index
    %c0_123 = arith.constant 0 : index
    %294 = vector.load %arg1[%c9_121, %c0_122, %c0_123] : memref<10x40x128xf32, #tpu.memory_space<vmem>>, vector<1x40x128xf32>
    %295 = vector.shape_cast %294 : vector<1x40x128xf32> to vector<40x128xf32>
    %cst_124 = arith.constant dense<0.000000e+00> : vector<8x128xf32>
    %296 = tpu.matmul %293, %295, %cst_124 {dimension_numbers = #tpu.dot_dimension_numbers<[1], [0], [0], [1], [0, 0, 1, 1], [], []>} : vector<8x40xf32>, vector<40x128xf32>, vector<8x128xf32> -> vector<8x128xf32>
    %c18 = arith.constant 18 : index
    %c0_125 = arith.constant 0 : index
    %297 = vector.load %arg2[%c18, %c0_125] : memref<19x128xf32, #tpu.memory_space<vmem>>, vector<1x128xf32>
    %298 = vector.broadcast %297 : vector<1x128xf32> to vector<8x128xf32>
    %299 = arith.addf %296, %298 : vector<8x128xf32>
    %c0_126 = arith.constant 0 : index
    %c0_127 = arith.constant 0 : index
    %300 = vector.load %arg3[%c0_126, %c0_127] : memref<8x128xf32, #tpu.memory_space<vmem>>, vector<8x128xf32>
    tpu.vector_store %arg3[%c0_126, %c0_127], %299 {strides = array<i32>} : memref<8x128xf32, #tpu.memory_space<vmem>>, vector<8x128xf32>,
    return
  }
}

</mosaic_0001>

<llo_original>
// kernel: wave_resnet_forward.1
$region0: #{wave_resnet_forward.1}
  #allocation0 [shape = 'u32[]', space=smem, size = 0x4, offset = 0x4, fixed_abs, tag = 'smem constant byte address 0x4 - core index']
  #allocation1 [shape = 'u32[144,128]{1,0:T(1,128)}', space=vmem, size = 0x12000, scoped, tag = 'internal scratch']
  %s0 = inlined_call_operand.hbm [shape: f32[8,40], index: 0, kind: input, shape index: {}]
  %s1 = inlined_call_operand.hbm [shape: f32[10,40,128], index: 1, kind: input, shape index: {}]
  %s2 = inlined_call_operand.hbm [shape: f32[19,128], index: 2, kind: input, shape index: {}]
  %s3 = inlined_call_operand.hbm [shape: f32[8,128], index: 3, kind: output, shape index: {}]
  %s4 = sld [smem:[#allocation0]]
  $region34: #{wave_resnet_forward.1} parent=0
    _
  %s6 = ssub.s32 1, %s4
  %s7 = scalar_select 0, %s6, %s4
  $region1: #{wave_resnet_forward.1} parent=0
    #allocation2 [shape = 'u8[4096]{0}', space=vmem, size = 0x1000, scoped, tag = 'input window, operand 0, single buffered']
    #allocation3 [shape = 's32[1]{0}', space=sflag, size = 0x4, scoped, tag = 'scoped memory for wave_resnet_forward.1']
    #allocation4 [shape = 's32[1]{0}', space=sflag, size = 0x4, scoped, tag = 'scoped memory for wave_resnet_forward.1']
    #allocation5 [shape = 'u8[204800]{0}', space=vmem, size = 0x32000, scoped, tag = 'input window, operand 1, single buffered']
    #allocation6 [shape = 's32[1]{0}', space=sflag, size = 0x4, scoped, tag = 'scoped memory for wave_resnet_forward.1']
    #allocation7 [shape = 'u8[12288]{0}', space=vmem, size = 0x3000, scoped, tag = 'input window, operand 2, single buffered']
    #allocation8 [shape = 'u8[4096]{0}', space=vmem, size = 0x1000, scoped, tag = 'output window, operand 0, single buffered']
    %8 = vsyncpa [#allocation3], 0
    %9 = vsyncpa [#allocation6], 0
    %10 = vsyncpa [#allocation4], 0
    // Predicated region
    $region2: #{wave_resnet_forward.1} parent=1 // pred_check
      _
    $region3: #{wave_resnet_forward.1} parent=1 // pred_check_branch
      %12 = sbr.rel (0) target = $region5
    $region4: #{wave_resnet_forward.1} parent=1 // pred_region
      %s14 = ssub.s32 128, 128
      %15 = vsyncadd [#allocation3], %s14
      %s17 = sshll.u32 [#allocation2], 4
      %s18 = int_to_ptr.vmem [resolvable:$true] %s17
      %20 = dma.hbm_to_vmem [thread:$0]  %s0, 128, %s18, [#allocation3]
    $region5: #{wave_resnet_forward.1} parent=1 // pred_fallthru
      _
    // Predicated region
    $region6: #{wave_resnet_forward.1} parent=1 // pred_check
      _
    $region7: #{wave_resnet_forward.1} parent=1 // pred_check_branch
      %22 = sbr.rel (0) target = $region9
    $region8: #{wave_resnet_forward.1} parent=1 // pred_region
      %s24 = ssub.s32 6400, 6400
      %25 = vsyncadd [#allocation6], %s24
      %s26 = sshll.u32 [#allocation5], 4
      %s27 = int_to_ptr.vmem [resolvable:$true] %s26
      %32 = dma.hbm_to_vmem [thread:$0]  %s1, 6400, %s27, [#allocation6], 128, 128, 8
    $region9: #{wave_resnet_forward.1} parent=1 // pred_fallthru
      _
    // Predicated region
    $region10: #{wave_resnet_forward.1} parent=1 // pred_check
      _
    $region11: #{wave_resnet_forward.1} parent=1 // pred_check_branch
      %34 = sbr.rel (0) target = $region13
    $region12: #{wave_resnet_forward.1} parent=1 // pred_region
      %s36 = ssub.s32 384, 384
      %37 = vsyncadd [#allocation6], %s36
      %s38 = sshll.u32 [#allocation7], 4
      %s39 = int_to_ptr.vmem [resolvable:$true] %s38
      %44 = dma.hbm_to_vmem [thread:$0]  %s2, 384, %s39, [#allocation6], 128, 128, 8
    $region13: #{wave_resnet_forward.1} parent=1 // pred_fallthru
      _
    // Predicated region
    $region14: #{wave_resnet_forward.1} parent=1 // pred_check
      _
    $region15: #{wave_resnet_forward.1} parent=1 // pred_check_branch
      %46 = sbr.rel (0) target = $region17
    $region16: #{wave_resnet_forward.1} parent=1 // pred_region
      %47 = dma.done [#allocation3], 128
    $region17: #{wave_resnet_forward.1} parent=1 // pred_fallthru
      _
    // Predicated region
    $region18: #{wave_resnet_forward.1} parent=1 // pred_check
      _
    $region19: #{wave_resnet_forward.1} parent=1 // pred_check_branch
      %49 = sbr.rel (0) target = $region21
    $region20: #{wave_resnet_forward.1} parent=1 // pred_region
      %50 = dma.done [#allocation6], 6400
    $region21: #{wave_resnet_forward.1} parent=1 // pred_fallthru
      _
    // Predicated region
    $region22: #{wave_resnet_forward.1} parent=1 // pred_check
      _
    $region23: #{wave_resnet_forward.1} parent=1 // pred_check_branch
      %52 = sbr.rel (0) target = $region25
    $region24: #{wave_resnet_forward.1} parent=1 // pred_region
      %53 = dma.done [#allocation6], 384
    $region25: #{wave_resnet_forward.1} parent=1 // pred_fallthru
      _
    %v54 = vld [vmem:[#allocation2] sm:$0xff]
    %v55 = vld [vmem:[#allocation5] sm:$0xff]
    %v56 = vld [vmem:[#allocation5 + $0x8] sm:$0xff]
    %v57 = vld [vmem:[#allocation5 + $0x10] sm:$0xff]
    %v58 = vld [vmem:[#allocation5 + $0x18] sm:$0xff]
    %v59 = vld [vmem:[#allocation5 + $0x20] sm:$0xff]
    %vm60 = vcmask 326656
    %v62 = vsel %vm60, %v54, 0
    %64 = vmatprep.subr.mxu0 0.0
    %65 = vmatpush1.msra.mxu0 0.0
    %66 = vmatprep.subr.mxu0 0.0
    %67 = vmatpush1.msra.mxu0 0.0
    %68 = vmatprep.subr.mxu0 0.0
    %69 = vmatpush1.msra.mxu0 0.0
    %70 = vmatprep.subr.mxu0 0.0
    %71 = vmatpush1.msra.mxu0 0.0
    %72 = vmatprep.subr.mxu0 0.0
    %73 = vmatpush1.msra.mxu0 0.0
    %74 = vmatprep.subr.mxu0 0.0
    %75 = vmatpush1.msra.mxu0 0.0
    %76 = vmatprep.subr.mxu0 0.0
    %77 = vmatpush1.msra.mxu0 0.0
    %78 = vmatprep.subr.mxu0 0.0
    %79 = vmatpush1.msra.mxu0 0.0
    %80 = vmatprep.subr.mxu0 0.0
    %81 = vmatpush1.msra.mxu0 0.0
    %82 = vmatprep.subr.mxu0 0.0
    %83 = vmatpush1.msra.mxu0 0.0
    %84 = vmatprep.subr.mxu0 0.0
    %85 = vmatpush1.msra.mxu0 0.0
    %86 = vmatprep.subr.mxu0 0.0
    %87 = vmatpush1.msra.mxu0 %v59
    %88 = vmatprep.subr.mxu0 0.0
    %89 = vmatpush1.msra.mxu0 %v58
    %90 = vmatprep.subr.mxu0 0.0
    %91 = vmatpush1.msra.mxu0 %v57
    %92 = vmatprep.subr.mxu0 0.0
    %93 = vmatpush1.msra.mxu0 %v56
    %94 = vmatprep.subr.mxu0 0.0
    %95 = vmatpush1.msra.mxu0 %v55
    %96 = vmatprep.subr.mxu0 0.0
    %97 = vmatpush2.msra.mxu0 0.0
    %98 = vmatprep.subr.mxu0 0.0
    %99 = vmatpush2.msra.mxu0 0.0
    %100 = vmatprep.subr.mxu0 0.0
    %101 = vmatpush2.msra.mxu0 0.0
    %102 = vmatprep.subr.mxu0 0.0
    %103 = vmatpush2.msra.mxu0 0.0
    %104 = vmatprep.subr.mxu0 0.0
    %105 = vmatpush2.msra.mxu0 0.0
    %106 = vmatprep.subr.mxu0 0.0
    %107 = vmatpush2.msra.mxu0 0.0
    %108 = vmatprep.subr.mxu0 0.0
    %109 = vmatpush2.msra.mxu0 0.0
    %110 = vmatprep.subr.mxu0 0.0
    %111 = vmatpush2.msra.mxu0 0.0
    %112 = vmatprep.subr.mxu0 0.0
    %113 = vmatpush2.msra.mxu0 0.0
    %114 = vmatprep.subr.mxu0 0.0
    %115 = vmatpush2.msra.mxu0 0.0
    %116 = vmatprep.subr.mxu0 0.0
    %117 = vmatpush2.msra.mxu0 0.0
    %118 = vmatprep.subr.mxu0 0.0
    %119 = vmatpush2.msra.mxu0 0.0
    %120 = vmatprep.subr.mxu0 0.0
    %121 = vmatpush2.msra.mxu0 0.0
    %122 = vmatprep.subr.mxu0 0.0
    %123 = vmatpush2.msra.mxu0 0.0
    %124 = vmatprep.subr.mxu0 0.0
    %125 = vmatpush2.msra.mxu0 0.0
    %126 = vmatprep.subr.mxu0 0.0
    %127 = vmatpush2.msra.mxu0 0.0
    %128 = vmatprep.mubr.f32.mxu0 0.0
    %129 = vmatmul.mubr.f32.gmra.mxu0 %v62
    %v130 = vpop.f32.mrf.mxu0
    %v131 = vadd.f32 0.0, %v130
    %v132 = vpop.f32.mrf.mxu0
    %133 = vdwg.mxu0
    %v134 = vrot.slane %v131, 4
    %v135 = vadd.f32 %v131, %v134
    %v136 = vrot.slane %v135, 2
    %v137 = vadd.f32 %v135, %v136
    %v138 = vrot.slane %v137, 1
    %v139 = vadd.f32 %v137, %v138
    %v140 = vrcp.pop 8.0
    %v141 = vmul.f32 %v139, %v140
    %v142 = vmul.f32 %v131, %v131
    %v143 = vrot.slane %v142, 4
    %v144 = vadd.f32 %v142, %v143
    %v145 = vrot.slane %v144, 2
    %v146 = vadd.f32 %v144, %v145
    %v147 = vrot.slane %v146, 1
    %v148 = vadd.f32 %v146, %v147
    %v149 = vmul.f32 %v148, %v140
    %v150 = vmul.f32 %v141, %v141
    %v151 = vsub.f32 %v149, %v150
    %v152 = vmax.f32 %v151, 0.0
    %v153 = vld [vmem:[#allocation7] sm:$0x1]
    %v154 = vadd.f32 %v152, 1e-05
    %v155 = vrsqrt.pop %v154
    %v156 = vmul.f32 %v153, %v155
    %v157 = vsub.f32 %v131, %v141
    %v158 = vlaneseq
    %v159 = vshrl.u32 %v158, 7
    %v160 = vsub.s32 0, %v159
    %v161 = vrot.slane %v156, %v160
    %v162 = vmul.f32 %v157, %v161
    %v163 = vld [vmem:[#allocation7 + $0x9] sm:$0x1]
    %v164 = vlaneseq
    %v165 = vshrl.u32 %v164, 7
    %v166 = vsub.s32 0, %v165
    %v167 = vrot.slane %v163, %v166
    %v168 = vadd.f32 %v162, %v167
    %s169 = scalar_lea.vmem [#allocation5], 40
    %v170 = vld [vmem:[%s169] sm:$0xff]
    %v171 = vld [vmem:[%s169 + $0x8] sm:$0xff]
    %v172 = vld [vmem:[%s169 + $0x10] sm:$0xff]
    %v173 = vld [vmem:[%s169 + $0x18] sm:$0xff]
    %v174 = vld [vmem:[%s169 + $0x20] sm:$0xff]
    %175 = vmatprep.subr.mxu0 0.0
    %176 = vmatpush1.msra.mxu0 0.0
    %177 = vmatprep.subr.mxu0 0.0
    %178 = vmatpush1.msra.mxu0 0.0
    %179 = vmatprep.subr.mxu0 0.0
    %180 = vmatpush1.msra.mxu0 0.0
    %181 = vmatprep.subr.mxu0 0.0
    %182 = vmatpush1.msra.mxu0 0.0
    %183 = vmatprep.subr.mxu0 0.0
    %184 = vmatpush1.msra.mxu0 0.0
    %185 = vmatprep.subr.mxu0 0.0
    %186 = vmatpush1.msra.mxu0 0.0
    %187 = vmatprep.subr.mxu0 0.0
    %188 = vmatpush1.msra.mxu0 0.0
    %189 = vmatprep.subr.mxu0 0.0
    %190 = vmatpush1.msra.mxu0 0.0
    %191 = vmatprep.subr.mxu0 0.0
    %192 = vmatpush1.msra.mxu0 0.0
    %193 = vmatprep.subr.mxu0 0.0
    %194 = vmatpush1.msra.mxu0 0.0
    %195 = vmatprep.subr.mxu0 0.0
    %196 = vmatpush1.msra.mxu0 0.0
    %197 = vmatprep.subr.mxu0 0.0
    %198 = vmatpush1.msra.mxu0 %v174
    %199 = vmatprep.subr.mxu0 0.0
    %200 = vmatpush1.msra.mxu0 %v173
    %201 = vmatprep.subr.mxu0 0.0
    %202 = vmatpush1.msra.mxu0 %v172
    %203 = vmatprep.subr.mxu0 0.0
    %204 = vmatpush1.msra.mxu0 %v171
    %205 = vmatprep.subr.mxu0 0.0
    %206 = vmatpush1.msra.mxu0 %v170
    %207 = vmatprep.subr.mxu0 0.0
    %208 = vmatpush2.msra.mxu0 0.0
    %209 = vmatprep.subr.mxu0 0.0
    %210 = vmatpush2.msra.mxu0 0.0
    %211 = vmatprep.subr.mxu0 0.0
    %212 = vmatpush2.msra.mxu0 0.0
    %213 = vmatprep.subr.mxu0 0.0
    %214 = vmatpush2.msra.mxu0 0.0
    %215 = vmatprep.subr.mxu0 0.0
    %216 = vmatpush2.msra.mxu0 0.0
    %217 = vmatprep.subr.mxu0 0.0
    %218 = vmatpush2.msra.mxu0 0.0
    %219 = vmatprep.subr.mxu0 0.0
    %220 = vmatpush2.msra.mxu0 0.0
    %221 = vmatprep.subr.mxu0 0.0
    %222 = vmatpush2.msra.mxu0 0.0
    %223 = vmatprep.subr.mxu0 0.0
    %224 = vmatpush2.msra.mxu0 0.0
    %225 = vmatprep.subr.mxu0 0.0
    %226 = vmatpush2.msra.mxu0 0.0
    %227 = vmatprep.subr.mxu0 0.0
    %228 = vmatpush2.msra.mxu0 0.0
    %229 = vmatprep.subr.mxu0 0.0
    %230 = vmatpush2.msra.mxu0 0.0
    %231 = vmatprep.subr.mxu0 0.0
    %232 = vmatpush2.msra.mxu0 0.0
    %233 = vmatprep.subr.mxu0 0.0
    %234 = vmatpush2.msra.mxu0 0.0
    %235 = vmatprep.subr.mxu0 0.0
    %236 = vmatpush2.msra.mxu0 0.0
    %237 = vmatprep.subr.mxu0 0.0
    %238 = vmatpush2.msra.mxu0 0.0
    %239 = vmatprep.mubr.f32.mxu0 0.0
    %240 = vmatmul.mubr.f32.gmra.mxu0 %v62
    %v241 = vpop.f32.mrf.mxu0
    %v242 = vadd.f32 0.0, %v241
    %v243 = vpop.f32.mrf.mxu0
    %244 = vdwg.mxu0
    %v245 = vrot.slane %v242, 4
    %v246 = vadd.f32 %v242, %v245
    %v247 = vrot.slane %v246, 2
    %v248 = vadd.f32 %v246, %v247
    %v249 = vrot.slane %v248, 1
    %v250 = vadd.f32 %v248, %v249
    %v251 = vmul.f32 %v250, %v140
    %v252 = vmul.f32 %v242, %v242
    %v253 = vrot.slane %v252, 4
    %v254 = vadd.f32 %v252, %v253
    %v255 = vrot.slane %v254, 2
    %v256 = vadd.f32 %v254, %v255
    %v257 = vrot.slane %v256, 1
    %v258 = vadd.f32 %v256, %v257
    %v259 = vmul.f32 %v258, %v140
    %v260 = vmul.f32 %v251, %v251
    %v261 = vsub.f32 %v259, %v260
    %v262 = vmax.f32 %v261, 0.0
    %v263 = vld [vmem:[#allocation7 + $0x1] sm:$0x1]
    %v264 = vadd.f32 %v262, 1e-05
    %v265 = vrsqrt.pop %v264
    %v266 = vmul.f32 %v263, %v265
    %v267 = vsub.f32 %v242, %v251
    %v268 = vlaneseq
    %v269 = vshrl.u32 %v268, 7
    %v270 = vsub.s32 0, %v269
    %v271 = vrot.slane %v266, %v270
    %v272 = vmul.f32 %v267, %v271
    %v273 = vld [vmem:[#allocation7 + $0xa] sm:$0x1]
    %v274 = vlaneseq
    %v275 = vshrl.u32 %v274, 7
    %v276 = vsub.s32 0, %v275
    %v277 = vrot.slane %v273, %v276
    %v278 = vadd.f32 %v272, %v277
    %vm279 = vcmp.ge.f32.partialorder %v278, 0.0
    %v280 = vmul.f32 %v278, 0.01
    %v281 = vsel %vm279, %v278, %v280
    %s282 = scalar_lea.vmem [#allocation5], 80
    %v283 = vld [vmem:[%s282] sm:$0xff]
    %v284 = vld [vmem:[%s282 + $0x8] sm:$0xff]
    %v285 = vld [vmem:[%s282 + $0x10] sm:$0xff]
    %v286 = vld [vmem:[%s282 + $0x18] sm:$0xff]
    %v287 = vld [vmem:[%s282 + $0x20] sm:$0xff]
    %v289 = vsel %vm60, %v281, 0
    %291 = vmatprep.subr.mxu0 0.0
    %292 = vmatpush1.msra.mxu0 0.0
    %293 = vmatprep.subr.mxu0 0.0
    %294 = vmatpush1.msra.mxu0 0.0
    %295 = vmatprep.subr.mxu0 0.0
    %296 = vmatpush1.msra.mxu0 0.0
    %297 = vmatprep.subr.mxu0 0.0
    %298 = vmatpush1.msra.mxu0 0.0
    %299 = vmatprep.subr.mxu0 0.0
    %300 = vmatpush1.msra.mxu0 0.0
    %301 = vmatprep.subr.mxu0 0.0
    %302 = vmatpush1.msra.mxu0 0.0
    %303 = vmatprep.subr.mxu0 0.0
    %304 = vmatpush1.msra.mxu0 0.0
    %305 = vmatprep.subr.mxu0 0.0
    %306 = vmatpush1.msra.mxu0 0.0
    %307 = vmatprep.subr.mxu0 0.0
    %308 = vmatpush1.msra.mxu0 0.0
    %309 = vmatprep.subr.mxu0 0.0
    %310 = vmatpush1.msra.mxu0 0.0
    %311 = vmatprep.subr.mxu0 0.0
    %312 = vmatpush1.msra.mxu0 0.0
    %313 = vmatprep.subr.mxu0 0.0
    %314 = vmatpush1.msra.mxu0 %v287
    %315 = vmatprep.subr.mxu0 0.0
    %316 = vmatpush1.msra.mxu0 %v286
    %317 = vmatprep.subr.mxu0 0.0
    %318 = vmatpush1.msra.mxu0 %v285
    %319 = vmatprep.subr.mxu0 0.0
    %320 = vmatpush1.msra.mxu0 %v284
    %321 = vmatprep.subr.mxu0 0.0
    %322 = vmatpush1.msra.mxu0 %v283
    %323 = vmatprep.subr.mxu0 0.0
    %324 = vmatpush2.msra.mxu0 0.0
    %325 = vmatprep.subr.mxu0 0.0
    %326 = vmatpush2.msra.mxu0 0.0
    %327 = vmatprep.subr.mxu0 0.0
    %328 = vmatpush2.msra.mxu0 0.0
    %329 = vmatprep.subr.mxu0 0.0
    %330 = vmatpush2.msra.mxu0 0.0
    %331 = vmatprep.subr.mxu0 0.0
    %332 = vmatpush2.msra.mxu0 0.0
    %333 = vmatprep.subr.mxu0 0.0
    %334 = vmatpush2.msra.mxu0 0.0
    %335 = vmatprep.subr.mxu0 0.0
    %336 = vmatpush2.msra.mxu0 0.0
    %337 = vmatprep.subr.mxu0 0.0
    %338 = vmatpush2.msra.mxu0 0.0
    %339 = vmatprep.subr.mxu0 0.0
    %340 = vmatpush2.msra.mxu0 0.0
    %341 = vmatprep.subr.mxu0 0.0
    %342 = vmatpush2.msra.mxu0 0.0
    %343 = vmatprep.subr.mxu0 0.0
    %344 = vmatpush2.msra.mxu0 0.0
    %345 = vmatprep.subr.mxu0 0.0
    %346 = vmatpush2.msra.mxu0 0.0
    %347 = vmatprep.subr.mxu0 0.0
    %348 = vmatpush2.msra.mxu0 0.0
    %349 = vmatprep.subr.mxu0 0.0
    %350 = vmatpush2.msra.mxu0 0.0
    %351 = vmatprep.subr.mxu0 0.0
    %352 = vmatpush2.msra.mxu0 0.0
    %353 = vmatprep.subr.mxu0 0.0
    %354 = vmatpush2.msra.mxu0 0.0
    %355 = vmatprep.mubr.f32.mxu0 0.0
    %356 = vmatmul.mubr.f32.gmra.mxu0 %v289
    %v357 = vpop.f32.mrf.mxu0
    %v358 = vadd.f32 0.0, %v357
    %v359 = vpop.f32.mrf.mxu0
    %360 = vdwg.mxu0
    %v361 = vrot.slane %v358, 4
    %v362 = vadd.f32 %v358, %v361
    %v363 = vrot.slane %v362, 2
    %v364 = vadd.f32 %v362, %v363
    %v365 = vrot.slane %v364, 1
    %v366 = vadd.f32 %v364, %v365
    %v367 = vmul.f32 %v366, %v140
    %v368 = vmul.f32 %v358, %v358
    %v369 = vrot.slane %v368, 4
    %v370 = vadd.f32 %v368, %v369
    %v371 = vrot.slane %v370, 2
    %v372 = vadd.f32 %v370, %v371
    %v373 = vrot.slane %v372, 1
    %v374 = vadd.f32 %v372, %v373
    %v375 = vmul.f32 %v374, %v140
    %v376 = vmul.f32 %v367, %v367
    %v377 = vsub.f32 %v375, %v376
    %v378 = vmax.f32 %v377, 0.0
    %v379 = vld [vmem:[#allocation7 + $0x2] sm:$0x1]
    %v380 = vadd.f32 %v378, 1e-05
    %v381 = vrsqrt.pop %v380
    %v382 = vmul.f32 %v379, %v381
    %v383 = vsub.f32 %v358, %v367
    %v384 = vlaneseq
    %v385 = vshrl.u32 %v384, 7
    %v386 = vsub.s32 0, %v385
    %v387 = vrot.slane %v382, %v386
    %v388 = vmul.f32 %v383, %v387
    %v389 = vld [vmem:[#allocation7 + $0xb] sm:$0x1]
    %v390 = vlaneseq
    %v391 = vshrl.u32 %v390, 7
    %v392 = vsub.s32 0, %v391
    %v393 = vrot.slane %v389, %v392
    %v394 = vadd.f32 %v388, %v393
    %vm395 = vcmp.ge.f32.partialorder %v394, 0.0
    %v396 = vmul.f32 %v394, 0.01
    %v397 = vsel %vm395, %v394, %v396
    %v398 = vadd.f32 %v397, %v168
    %s399 = scalar_lea.vmem [#allocation5], 120
    %v400 = vld [vmem:[%s399] sm:$0xff]
    %v401 = vld [vmem:[%s399 + $0x8] sm:$0xff]
    %v402 = vld [vmem:[%s399 + $0x10] sm:$0xff]
    %v403 = vld [vmem:[%s399 + $0x18] sm:$0xff]
    %v404 = vld [vmem:[%s399 + $0x20] sm:$0xff]
    %v406 = vsel %vm60, %v398, 0
    %408 = vmatprep.subr.mxu0 0.0
    %409 = vmatpush1.msra.mxu0 0.0
    %410 = vmatprep.subr.mxu0 0.0
    %411 = vmatpush1.msra.mxu0 0.0
    %412 = vmatprep.subr.mxu0 0.0
    %413 = vmatpush1.msra.mxu0 0.0
    %414 = vmatprep.subr.mxu0 0.0
    %415 = vmatpush1.msra.mxu0 0.0
    %416 = vmatprep.subr.mxu0 0.0
    %417 = vmatpush1.msra.mxu0 0.0
    %418 = vmatprep.subr.mxu0 0.0
    %419 = vmatpush1.msra.mxu0 0.0
    %420 = vmatprep.subr.mxu0 0.0
    %421 = vmatpush1.msra.mxu0 0.0
    %422 = vmatprep.subr.mxu0 0.0
    %423 = vmatpush1.msra.mxu0 0.0
    %424 = vmatprep.subr.mxu0 0.0
    %425 = vmatpush1.msra.mxu0 0.0
    %426 = vmatprep.subr.mxu0 0.0
    %427 = vmatpush1.msra.mxu0 0.0
    %428 = vmatprep.subr.mxu0 0.0
    %429 = vmatpush1.msra.mxu0 0.0
    %430 = vmatprep.subr.mxu0 0.0
    %431 = vmatpush1.msra.mxu0 %v404
    %432 = vmatprep.subr.mxu0 0.0
    %433 = vmatpush1.msra.mxu0 %v403
    %434 = vmatprep.subr.mxu0 0.0
    %435 = vmatpush1.msra.mxu0 %v402
    %436 = vmatprep.subr.mxu0 0.0
    %437 = vmatpush1.msra.mxu0 %v401
    %438 = vmatprep.subr.mxu0 0.0
    %439 = vmatpush1.msra.mxu0 %v400
    %440 = vmatprep.subr.mxu0 0.0
    %441 = vmatpush2.msra.mxu0 0.0
    %442 = vmatprep.subr.mxu0 0.0
    %443 = vmatpush2.msra.mxu0 0.0
    %444 = vmatprep.subr.mxu0 0.0
    %445 = vmatpush2.msra.mxu0 0.0
    %446 = vmatprep.subr.mxu0 0.0
    %447 = vmatpush2.msra.mxu0 0.0
    %448 = vmatprep.subr.mxu0 0.0
    %449 = vmatpush2.msra.mxu0 0.0
    %450 = vmatprep.subr.mxu0 0.0
    %451 = vmatpush2.msra.mxu0 0.0
    %452 = vmatprep.subr.mxu0 0.0
    %453 = vmatpush2.msra.mxu0 0.0
    %454 = vmatprep.subr.mxu0 0.0
    %455 = vmatpush2.msra.mxu0 0.0
    %456 = vmatprep.subr.mxu0 0.0
    %457 = vmatpush2.msra.mxu0 0.0
    %458 = vmatprep.subr.mxu0 0.0
    %459 = vmatpush2.msra.mxu0 0.0
    %460 = vmatprep.subr.mxu0 0.0
    %461 = vmatpush2.msra.mxu0 0.0
    %462 = vmatprep.subr.mxu0 0.0
    %463 = vmatpush2.msra.mxu0 0.0
    %464 = vmatprep.subr.mxu0 0.0
    %465 = vmatpush2.msra.mxu0 0.0
    %466 = vmatprep.subr.mxu0 0.0
    %467 = vmatpush2.msra.mxu0 0.0
    %468 = vmatprep.subr.mxu0 0.0
    %469 = vmatpush2.msra.mxu0 0.0
    %470 = vmatprep.subr.mxu0 0.0
    %471 = vmatpush2.msra.mxu0 0.0
    %472 = vmatprep.mubr.f32.mxu0 0.0
    %473 = vmatmul.mubr.f32.gmra.mxu0 %v406
    %v474 = vpop.f32.mrf.mxu0
    %v475 = vadd.f32 0.0, %v474
    %v476 = vpop.f32.mrf.mxu0
    %477 = vdwg.mxu0
    %v478 = vrot.slane %v475, 4
    %v479 = vadd.f32 %v475, %v478
    %v480 = vrot.slane %v479, 2
    %v481 = vadd.f32 %v479, %v480
    %v482 = vrot.slane %v481, 1
    %v483 = vadd.f32 %v481, %v482
    %v484 = vmul.f32 %v483, %v140
    %v485 = vmul.f32 %v475, %v475
    %v486 = vrot.slane %v485, 4
    %v487 = vadd.f32 %v485, %v486
    %v488 = vrot.slane %v487, 2
    %v489 = vadd.f32 %v487, %v488
    %v490 = vrot.slane %v489, 1
    %v491 = vadd.f32 %v489, %v490
    %v492 = vmul.f32 %v491, %v140
    %v493 = vmul.f32 %v484, %v484
    %v494 = vsub.f32 %v492, %v493
    %v495 = vmax.f32 %v494, 0.0
    %v496 = vld [vmem:[#allocation7 + $0x3] sm:$0x1]
    %v497 = vadd.f32 %v495, 1e-05
    %v498 = vrsqrt.pop %v497
    %v499 = vmul.f32 %v496, %v498
    %v500 = vsub.f32 %v475, %v484
    %v501 = vlaneseq
    %v502 = vshrl.u32 %v501, 7
    %v503 = vsub.s32 0, %v502
    %v504 = vrot.slane %v499, %v503
    %v505 = vmul.f32 %v500, %v504
    %v506 = vld [vmem:[#allocation7 + $0xc] sm:$0x1]
    %v507 = vlaneseq
    %v508 = vshrl.u32 %v507, 7
    %v509 = vsub.s32 0, %v508
    %v510 = vrot.slane %v506, %v509
    %v511 = vadd.f32 %v505, %v510
    %s512 = scalar_lea.vmem [#allocation5], 160
    %v513 = vld [vmem:[%s512] sm:$0xff]
    %v514 = vld [vmem:[%s512 + $0x8] sm:$0xff]
    %v515 = vld [vmem:[%s512 + $0x10] sm:$0xff]
    %v516 = vld [vmem:[%s512 + $0x18] sm:$0xff]
    %v517 = vld [vmem:[%s512 + $0x20] sm:$0xff]
    %518 = vmatprep.subr.mxu0 0.0
    %519 = vmatpush1.msra.mxu0 0.0
    %520 = vmatprep.subr.mxu0 0.0
    %521 = vmatpush1.msra.mxu0 0.0
    %522 = vmatprep.subr.mxu0 0.0
    %523 = vmatpush1.msra.mxu0 0.0
    %524 = vmatprep.subr.mxu0 0.0
    %525 = vmatpush1.msra.mxu0 0.0
    %526 = vmatprep.subr.mxu0 0.0
    %527 = vmatpush1.msra.mxu0 0.0
    %528 = vmatprep.subr.mxu0 0.0
    %529 = vmatpush1.msra.mxu0 0.0
    %530 = vmatprep.subr.mxu0 0.0
    %531 = vmatpush1.msra.mxu0 0.0
    %532 = vmatprep.subr.mxu0 0.0
    %533 = vmatpush1.msra.mxu0 0.0
    %534 = vmatprep.subr.mxu0 0.0
    %535 = vmatpush1.msra.mxu0 0.0
    %536 = vmatprep.subr.mxu0 0.0
    %537 = vmatpush1.msra.mxu0 0.0
    %538 = vmatprep.subr.mxu0 0.0
    %539 = vmatpush1.msra.mxu0 0.0
    %540 = vmatprep.subr.mxu0 0.0
    %541 = vmatpush1.msra.mxu0 %v517
    %542 = vmatprep.subr.mxu0 0.0
    %543 = vmatpush1.msra.mxu0 %v516
    %544 = vmatprep.subr.mxu0 0.0
    %545 = vmatpush1.msra.mxu0 %v515
    %546 = vmatprep.subr.mxu0 0.0
    %547 = vmatpush1.msra.mxu0 %v514
    %548 = vmatprep.subr.mxu0 0.0
    %549 = vmatpush1.msra.mxu0 %v513
    %550 = vmatprep.subr.mxu0 0.0
    %551 = vmatpush2.msra.mxu0 0.0
    %552 = vmatprep.subr.mxu0 0.0
    %553 = vmatpush2.msra.mxu0 0.0
    %554 = vmatprep.subr.mxu0 0.0
    %555 = vmatpush2.msra.mxu0 0.0
    %556 = vmatprep.subr.mxu0 0.0
    %557 = vmatpush2.msra.mxu0 0.0
    %558 = vmatprep.subr.mxu0 0.0
    %559 = vmatpush2.msra.mxu0 0.0
    %560 = vmatprep.subr.mxu0 0.0
    %561 = vmatpush2.msra.mxu0 0.0
    %562 = vmatprep.subr.mxu0 0.0
    %563 = vmatpush2.msra.mxu0 0.0
    %564 = vmatprep.subr.mxu0 0.0
    %565 = vmatpush2.msra.mxu0 0.0
    %566 = vmatprep.subr.mxu0 0.0
    %567 = vmatpush2.msra.mxu0 0.0
    %568 = vmatprep.subr.mxu0 0.0
    %569 = vmatpush2.msra.mxu0 0.0
    %570 = vmatprep.subr.mxu0 0.0
    %571 = vmatpush2.msra.mxu0 0.0
    %572 = vmatprep.subr.mxu0 0.0
    %573 = vmatpush2.msra.mxu0 0.0
    %574 = vmatprep.subr.mxu0 0.0
    %575 = vmatpush2.msra.mxu0 0.0
    %576 = vmatprep.subr.mxu0 0.0
    %577 = vmatpush2.msra.mxu0 0.0
    %578 = vmatprep.subr.mxu0 0.0
    %579 = vmatpush2.msra.mxu0 0.0
    %580 = vmatprep.subr.mxu0 0.0
    %581 = vmatpush2.msra.mxu0 0.0
    %582 = vmatprep.mubr.f32.mxu0 0.0
    %583 = vmatmul.mubr.f32.gmra.mxu0 %v406
    %v584 = vpop.f32.mrf.mxu0
    %v585 = vadd.f32 0.0, %v584
    %v586 = vpop.f32.mrf.mxu0
    %587 = vdwg.mxu0
    %v588 = vrot.slane %v585, 4
    %v589 = vadd.f32 %v585, %v588
    %v590 = vrot.slane %v589, 2
    %v591 = vadd.f32 %v589, %v590
    %v592 = vrot.slane %v591, 1
    %v593 = vadd.f32 %v591, %v592
    %v594 = vmul.f32 %v593, %v140
    %v595 = vmul.f32 %v585, %v585
    %v596 = vrot.slane %v595, 4
    %v597 = vadd.f32 %v595, %v596
    %v598 = vrot.slane %v597, 2
    %v599 = vadd.f32 %v597, %v598
    %v600 = vrot.slane %v599, 1
    %v601 = vadd.f32 %v599, %v600
    %v602 = vmul.f32 %v601, %v140
    %v603 = vmul.f32 %v594, %v594
    %v604 = vsub.f32 %v602, %v603
    %v605 = vmax.f32 %v604, 0.0
    %v606 = vld [vmem:[#allocation7 + $0x4] sm:$0x1]
    %v607 = vadd.f32 %v605, 1e-05
    %v608 = vrsqrt.pop %v607
    %v609 = vmul.f32 %v606, %v608
    %v610 = vsub.f32 %v585, %v594
    %v611 = vlaneseq
    %v612 = vshrl.u32 %v611, 7
    %v613 = vsub.s32 0, %v612
    %v614 = vrot.slane %v609, %v613
    %v615 = vmul.f32 %v610, %v614
    %v616 = vld [vmem:[#allocation7 + $0xd] sm:$0x1]
    %v617 = vlaneseq
    %v618 = vshrl.u32 %v617, 7
    %v619 = vsub.s32 0, %v618
    %v620 = vrot.slane %v616, %v619
    %v621 = vadd.f32 %v615, %v620
    %vm622 = vcmp.ge.f32.partialorder %v621, 0.0
    %v623 = vmul.f32 %v621, 0.01
    %v624 = vsel %vm622, %v621, %v623
    %s625 = scalar_lea.vmem [#allocation5], 200
    %v626 = vld [vmem:[%s625] sm:$0xff]
    %v627 = vld [vmem:[%s625 + $0x8] sm:$0xff]
    %v628 = vld [vmem:[%s625 + $0x10] sm:$0xff]
    %v629 = vld [vmem:[%s625 + $0x18] sm:$0xff]
    %v630 = vld [vmem:[%s625 + $0x20] sm:$0xff]
    %v632 = vsel %vm60, %v624, 0
    %634 = vmatprep.subr.mxu0 0.0
    %635 = vmatpush1.msra.mxu0 0.0
    %636 = vmatprep.subr.mxu0 0.0
    %637 = vmatpush1.msra.mxu0 0.0
    %638 = vmatprep.subr.mxu0 0.0
    %639 = vmatpush1.msra.mxu0 0.0
    %640 = vmatprep.subr.mxu0 0.0
    %641 = vmatpush1.msra.mxu0 0.0
    %642 = vmatprep.subr.mxu0 0.0
    %643 = vmatpush1.msra.mxu0 0.0
    %644 = vmatprep.subr.mxu0 0.0
    %645 = vmatpush1.msra.mxu0 0.0
    %646 = vmatprep.subr.mxu0 0.0
    %647 = vmatpush1.msra.mxu0 0.0
    %648 = vmatprep.subr.mxu0 0.0
    %649 = vmatpush1.msra.mxu0 0.0
    %650 = vmatprep.subr.mxu0 0.0
    %651 = vmatpush1.msra.mxu0 0.0
    %652 = vmatprep.subr.mxu0 0.0
    %653 = vmatpush1.msra.mxu0 0.0
    %654 = vmatprep.subr.mxu0 0.0
    %655 = vmatpush1.msra.mxu0 0.0
    %656 = vmatprep.subr.mxu0 0.0
    %657 = vmatpush1.msra.mxu0 %v630
    %658 = vmatprep.subr.mxu0 0.0
    %659 = vmatpush1.msra.mxu0 %v629
    %660 = vmatprep.subr.mxu0 0.0
    %661 = vmatpush1.msra.mxu0 %v628
    %662 = vmatprep.subr.mxu0 0.0
    %663 = vmatpush1.msra.mxu0 %v627
    %664 = vmatprep.subr.mxu0 0.0
    %665 = vmatpush1.msra.mxu0 %v626
    %666 = vmatprep.subr.mxu0 0.0
    %667 = vmatpush2.msra.mxu0 0.0
    %668 = vmatprep.subr.mxu0 0.0
    %669 = vmatpush2.msra.mxu0 0.0
    %670 = vmatprep.subr.mxu0 0.0
    %671 = vmatpush2.msra.mxu0 0.0
    %672 = vmatprep.subr.mxu0 0.0
    %673 = vmatpush2.msra.mxu0 0.0
    %674 = vmatprep.subr.mxu0 0.0
    %675 = vmatpush2.msra.mxu0 0.0
    %676 = vmatprep.subr.mxu0 0.0
    %677 = vmatpush2.msra.mxu0 0.0
    %678 = vmatprep.subr.mxu0 0.0
    %679 = vmatpush2.msra.mxu0 0.0
    %680 = vmatprep.subr.mxu0 0.0
    %681 = vmatpush2.msra.mxu0 0.0
    %682 = vmatprep.subr.mxu0 0.0
    %683 = vmatpush2.msra.mxu0 0.0
    %684 = vmatprep.subr.mxu0 0.0
    %685 = vmatpush2.msra.mxu0 0.0
    %686 = vmatprep.subr.mxu0 0.0
    %687 = vmatpush2.msra.mxu0 0.0
    %688 = vmatprep.subr.mxu0 0.0
    %689 = vmatpush2.msra.mxu0 0.0
    %690 = vmatprep.subr.mxu0 0.0
    %691 = vmatpush2.msra.mxu0 0.0
    %692 = vmatprep.subr.mxu0 0.0
    %693 = vmatpush2.msra.mxu0 0.0
    %694 = vmatprep.subr.mxu0 0.0
    %695 = vmatpush2.msra.mxu0 0.0
    %696 = vmatprep.subr.mxu0 0.0
    %697 = vmatpush2.msra.mxu0 0.0
    %698 = vmatprep.mubr.f32.mxu0 0.0
    %699 = vmatmul.mubr.f32.gmra.mxu0 %v632
    %v700 = vpop.f32.mrf.mxu0
    %v701 = vadd.f32 0.0, %v700
    %v702 = vpop.f32.mrf.mxu0
    %703 = vdwg.mxu0
    %v704 = vrot.slane %v701, 4
    %v705 = vadd.f32 %v701, %v704
    %v706 = vrot.slane %v705, 2
    %v707 = vadd.f32 %v705, %v706
    %v708 = vrot.slane %v707, 1
    %v709 = vadd.f32 %v707, %v708
    %v710 = vmul.f32 %v709, %v140
    %v711 = vmul.f32 %v701, %v701
    %v712 = vrot.slane %v711, 4
    %v713 = vadd.f32 %v711, %v712
    %v714 = vrot.slane %v713, 2
    %v715 = vadd.f32 %v713, %v714
    %v716 = vrot.slane %v715, 1
    %v717 = vadd.f32 %v715, %v716
    %v718 = vmul.f32 %v717, %v140
    %v719 = vmul.f32 %v710, %v710
    %v720 = vsub.f32 %v718, %v719
    %v721 = vmax.f32 %v720, 0.0
    %v722 = vld [vmem:[#allocation7 + $0x5] sm:$0x1]
    %v723 = vadd.f32 %v721, 1e-05
    %v724 = vrsqrt.pop %v723
    %v725 = vmul.f32 %v722, %v724
    %v726 = vsub.f32 %v701, %v710
    %v727 = vlaneseq
    %v728 = vshrl.u32 %v727, 7
    %v729 = vsub.s32 0, %v728
    %v730 = vrot.slane %v725, %v729
    %v731 = vmul.f32 %v726, %v730
    %v732 = vld [vmem:[#allocation7 + $0xe] sm:$0x1]
    %v733 = vlaneseq
    %v734 = vshrl.u32 %v733, 7
    %v735 = vsub.s32 0, %v734
    %v736 = vrot.slane %v732, %v735
    %v737 = vadd.f32 %v731, %v736
    %vm738 = vcmp.ge.f32.partialorder %v737, 0.0
    %v739 = vmul.f32 %v737, 0.01
    %v740 = vsel %vm738, %v737, %v739
    %v741 = vadd.f32 %v740, %v511
    %s742 = scalar_lea.vmem [#allocation5], 240
    %v743 = vld [vmem:[%s742] sm:$0xff]
    %v744 = vld [vmem:[%s742 + $0x8] sm:$0xff]
    %v745 = vld [vmem:[%s742 + $0x10] sm:$0xff]
    %v746 = vld [vmem:[%s742 + $0x18] sm:$0xff]
    %v747 = vld [vmem:[%s742 + $0x20] sm:$0xff]
    %v749 = vsel %vm60, %v741, 0
    %751 = vmatprep.subr.mxu0 0.0
    %752 = vmatpush1.msra.mxu0 0.0
    %753 = vmatprep.subr.mxu0 0.0
    %754 = vmatpush1.msra.mxu0 0.0
    %755 = vmatprep.subr.mxu0 0.0
    %756 = vmatpush1.msra.mxu0 0.0
    %757 = vmatprep.subr.mxu0 0.0
    %758 = vmatpush1.msra.mxu0 0.0
    %759 = vmatprep.subr.mxu0 0.0
    %760 = vmatpush1.msra.mxu0 0.0
    %761 = vmatprep.subr.mxu0 0.0
    %762 = vmatpush1.msra.mxu0 0.0
    %763 = vmatprep.subr.mxu0 0.0
    %764 = vmatpush1.msra.mxu0 0.0
    %765 = vmatprep.subr.mxu0 0.0
    %766 = vmatpush1.msra.mxu0 0.0
    %767 = vmatprep.subr.mxu0 0.0
    %768 = vmatpush1.msra.mxu0 0.0
    %769 = vmatprep.subr.mxu0 0.0
    %770 = vmatpush1.msra.mxu0 0.0
    %771 = vmatprep.subr.mxu0 0.0
    %772 = vmatpush1.msra.mxu0 0.0
    %773 = vmatprep.subr.mxu0 0.0
    %774 = vmatpush1.msra.mxu0 %v747
    %775 = vmatprep.subr.mxu0 0.0
    %776 = vmatpush1.msra.mxu0 %v746
    %777 = vmatprep.subr.mxu0 0.0
    %778 = vmatpush1.msra.mxu0 %v745
    %779 = vmatprep.subr.mxu0 0.0
    %780 = vmatpush1.msra.mxu0 %v744
    %781 = vmatprep.subr.mxu0 0.0
    %782 = vmatpush1.msra.mxu0 %v743
    %783 = vmatprep.subr.mxu0 0.0
    %784 = vmatpush2.msra.mxu0 0.0
    %785 = vmatprep.subr.mxu0 0.0
    %786 = vmatpush2.msra.mxu0 0.0
    %787 = vmatprep.subr.mxu0 0.0
    %788 = vmatpush2.msra.mxu0 0.0
    %789 = vmatprep.subr.mxu0 0.0
    %790 = vmatpush2.msra.mxu0 0.0
    %791 = vmatprep.subr.mxu0 0.0
    %792 = vmatpush2.msra.mxu0 0.0
    %793 = vmatprep.subr.mxu0 0.0
    %794 = vmatpush2.msra.mxu0 0.0
    %795 = vmatprep.subr.mxu0 0.0
    %796 = vmatpush2.msra.mxu0 0.0
    %797 = vmatprep.subr.mxu0 0.0
    %798 = vmatpush2.msra.mxu0 0.0
    %799 = vmatprep.subr.mxu0 0.0
    %800 = vmatpush2.msra.mxu0 0.0
    %801 = vmatprep.subr.mxu0 0.0
    %802 = vmatpush2.msra.mxu0 0.0
    %803 = vmatprep.subr.mxu0 0.0
    %804 = vmatpush2.msra.mxu0 0.0
    %805 = vmatprep.subr.mxu0 0.0
    %806 = vmatpush2.msra.mxu0 0.0
    %807 = vmatprep.subr.mxu0 0.0
    %808 = vmatpush2.msra.mxu0 0.0
    %809 = vmatprep.subr.mxu0 0.0
    %810 = vmatpush2.msra.mxu0 0.0
    %811 = vmatprep.subr.mxu0 0.0
    %812 = vmatpush2.msra.mxu0 0.0
    %813 = vmatprep.subr.mxu0 0.0
    %814 = vmatpush2.msra.mxu0 0.0
    %815 = vmatprep.mubr.f32.mxu0 0.0
    %816 = vmatmul.mubr.f32.gmra.mxu0 %v749
    %v817 = vpop.f32.mrf.mxu0
    %v818 = vadd.f32 0.0, %v817
    %v819 = vpop.f32.mrf.mxu0
    %820 = vdwg.mxu0
    %v821 = vrot.slane %v818, 4
    %v822 = vadd.f32 %v818, %v821
    %v823 = vrot.slane %v822, 2
    %v824 = vadd.f32 %v822, %v823
    %v825 = vrot.slane %v824, 1
    %v826 = vadd.f32 %v824, %v825
    %v827 = vmul.f32 %v826, %v140
    %v828 = vmul.f32 %v818, %v818
    %v829 = vrot.slane %v828, 4
    %v830 = vadd.f32 %v828, %v829
    %v831 = vrot.slane %v830, 2
    %v832 = vadd.f32 %v830, %v831
    %v833 = vrot.slane %v832, 1
    %v834 = vadd.f32 %v832, %v833
    %v835 = vmul.f32 %v834, %v140
    %v836 = vmul.f32 %v827, %v827
    %v837 = vsub.f32 %v835, %v836
    %v838 = vmax.f32 %v837, 0.0
    %v839 = vld [vmem:[#allocation7 + $0x6] sm:$0x1]
    %v840 = vadd.f32 %v838, 1e-05
    %v841 = vrsqrt.pop %v840
    %v842 = vmul.f32 %v839, %v841
    %v843 = vsub.f32 %v818, %v827
    %v844 = vlaneseq
    %v845 = vshrl.u32 %v844, 7
    %v846 = vsub.s32 0, %v845
    %v847 = vrot.slane %v842, %v846
    %v848 = vmul.f32 %v843, %v847
    %v849 = vld [vmem:[#allocation7 + $0xf] sm:$0x1]
    %v850 = vlaneseq
    %v851 = vshrl.u32 %v850, 7
    %v852 = vsub.s32 0, %v851
    %v853 = vrot.slane %v849, %v852
    %v854 = vadd.f32 %v848, %v853
    %s855 = scalar_lea.vmem [#allocation5], 280
    %v856 = vld [vmem:[%s855] sm:$0xff]
    %v857 = vld [vmem:[%s855 + $0x8] sm:$0xff]
    %v858 = vld [vmem:[%s855 + $0x10] sm:$0xff]
    %v859 = vld [vmem:[%s855 + $0x18] sm:$0xff]
    %v860 = vld [vmem:[%s855 + $0x20] sm:$0xff]
    %861 = vmatprep.subr.mxu0 0.0
    %862 = vmatpush1.msra.mxu0 0.0
    %863 = vmatprep.subr.mxu0 0.0
    %864 = vmatpush1.msra.mxu0 0.0
    %865 = vmatprep.subr.mxu0 0.0
    %866 = vmatpush1.msra.mxu0 0.0
    %867 = vmatprep.subr.mxu0 0.0
    %868 = vmatpush1.msra.mxu0 0.0
    %869 = vmatprep.subr.mxu0 0.0
    %870 = vmatpush1.msra.mxu0 0.0
    %871 = vmatprep.subr.mxu0 0.0
    %872 = vmatpush1.msra.mxu0 0.0
    %873 = vmatprep.subr.mxu0 0.0
    %874 = vmatpush1.msra.mxu0 0.0
    %875 = vmatprep.subr.mxu0 0.0
    %876 = vmatpush1.msra.mxu0 0.0
    %877 = vmatprep.subr.mxu0 0.0
    %878 = vmatpush1.msra.mxu0 0.0
    %879 = vmatprep.subr.mxu0 0.0
    %880 = vmatpush1.msra.mxu0 0.0
    %881 = vmatprep.subr.mxu0 0.0
    %882 = vmatpush1.msra.mxu0 0.0
    %883 = vmatprep.subr.mxu0 0.0
    %884 = vmatpush1.msra.mxu0 %v860
    %885 = vmatprep.subr.mxu0 0.0
    %886 = vmatpush1.msra.mxu0 %v859
    %887 = vmatprep.subr.mxu0 0.0
    %888 = vmatpush1.msra.mxu0 %v858
    %889 = vmatprep.subr.mxu0 0.0
    %890 = vmatpush1.msra.mxu0 %v857
    %891 = vmatprep.subr.mxu0 0.0
    %892 = vmatpush1.msra.mxu0 %v856
    %893 = vmatprep.subr.mxu0 0.0
    %894 = vmatpush2.msra.mxu0 0.0
    %895 = vmatprep.subr.mxu0 0.0
    %896 = vmatpush2.msra.mxu0 0.0
    %897 = vmatprep.subr.mxu0 0.0
    %898 = vmatpush2.msra.mxu0 0.0
    %899 = vmatprep.subr.mxu0 0.0
    %900 = vmatpush2.msra.mxu0 0.0
    %901 = vmatprep.subr.mxu0 0.0
    %902 = vmatpush2.msra.mxu0 0.0
    %903 = vmatprep.subr.mxu0 0.0
    %904 = vmatpush2.msra.mxu0 0.0
    %905 = vmatprep.subr.mxu0 0.0
    %906 = vmatpush2.msra.mxu0 0.0
    %907 = vmatprep.subr.mxu0 0.0
    %908 = vmatpush2.msra.mxu0 0.0
    %909 = vmatprep.subr.mxu0 0.0
    %910 = vmatpush2.msra.mxu0 0.0
    %911 = vmatprep.subr.mxu0 0.0
    %912 = vmatpush2.msra.mxu0 0.0
    %913 = vmatprep.subr.mxu0 0.0
    %914 = vmatpush2.msra.mxu0 0.0
    %915 = vmatprep.subr.mxu0 0.0
    %916 = vmatpush2.msra.mxu0 0.0
    %917 = vmatprep.subr.mxu0 0.0
    %918 = vmatpush2.msra.mxu0 0.0
    %919 = vmatprep.subr.mxu0 0.0
    %920 = vmatpush2.msra.mxu0 0.0
    %921 = vmatprep.subr.mxu0 0.0
    %922 = vmatpush2.msra.mxu0 0.0
    %923 = vmatprep.subr.mxu0 0.0
    %924 = vmatpush2.msra.mxu0 0.0
    %925 = vmatprep.mubr.f32.mxu0 0.0
    %926 = vmatmul.mubr.f32.gmra.mxu0 %v749
    %v927 = vpop.f32.mrf.mxu0
    %v928 = vadd.f32 0.0, %v927
    %v929 = vpop.f32.mrf.mxu0
    %930 = vdwg.mxu0
    %v931 = vrot.slane %v928, 4
    %v932 = vadd.f32 %v928, %v931
    %v933 = vrot.slane %v932, 2
    %v934 = vadd.f32 %v932, %v933
    %v935 = vrot.slane %v934, 1
    %v936 = vadd.f32 %v934, %v935
    %v937 = vmul.f32 %v936, %v140
    %v938 = vmul.f32 %v928, %v928
    %v939 = vrot.slane %v938, 4
    %v940 = vadd.f32 %v938, %v939
    %v941 = vrot.slane %v940, 2
    %v942 = vadd.f32 %v940, %v941
    %v943 = vrot.slane %v942, 1
    %v944 = vadd.f32 %v942, %v943
    %v945 = vmul.f32 %v944, %v140
    %v946 = vmul.f32 %v937, %v937
    %v947 = vsub.f32 %v945, %v946
    %v948 = vmax.f32 %v947, 0.0
    %v949 = vld [vmem:[#allocation7 + $0x7] sm:$0x1]
    %v950 = vadd.f32 %v948, 1e-05
    %v951 = vrsqrt.pop %v950
    %v952 = vmul.f32 %v949, %v951
    %v953 = vsub.f32 %v928, %v937
    %v954 = vlaneseq
    %v955 = vshrl.u32 %v954, 7
    %v956 = vsub.s32 0, %v955
    %v957 = vrot.slane %v952, %v956
    %v958 = vmul.f32 %v953, %v957
    %v959 = vld [vmem:[#allocation7 + $0x10] sm:$0x1]
    %v960 = vlaneseq
    %v961 = vshrl.u32 %v960, 7
    %v962 = vsub.s32 0, %v961
    %v963 = vrot.slane %v959, %v962
    %v964 = vadd.f32 %v958, %v963
    %vm965 = vcmp.ge.f32.partialorder %v964, 0.0
    %v966 = vmul.f32 %v964, 0.01
    %v967 = vsel %vm965, %v964, %v966
    %s968 = scalar_lea.vmem [#allocation5], 320
    %v969 = vld [vmem:[%s968] sm:$0xff]
    %v970 = vld [vmem:[%s968 + $0x8] sm:$0xff]
    %v971 = vld [vmem:[%s968 + $0x10] sm:$0xff]
    %v972 = vld [vmem:[%s968 + $0x18] sm:$0xff]
    %v973 = vld [vmem:[%s968 + $0x20] sm:$0xff]
    %v975 = vsel %vm60, %v967, 0
    %977 = vmatprep.subr.mxu0 0.0
    %978 = vmatpush1.msra.mxu0 0.0
    %979 = vmatprep.subr.mxu0 0.0
    %980 = vmatpush1.msra.mxu0 0.0
    %981 = vmatprep.subr.mxu0 0.0
    %982 = vmatpush1.msra.mxu0 0.0
    %983 = vmatprep.subr.mxu0 0.0
    %984 = vmatpush1.msra.mxu0 0.0
    %985 = vmatprep.subr.mxu0 0.0
    %986 = vmatpush1.msra.mxu0 0.0
    %987 = vmatprep.subr.mxu0 0.0
    %988 = vmatpush1.msra.mxu0 0.0
    %989 = vmatprep.subr.mxu0 0.0
    %990 = vmatpush1.msra.mxu0 0.0
    %991 = vmatprep.subr.mxu0 0.0
    %992 = vmatpush1.msra.mxu0 0.0
    %993 = vmatprep.subr.mxu0 0.0
    %994 = vmatpush1.msra.mxu0 0.0
    %995 = vmatprep.subr.mxu0 0.0
    %996 = vmatpush1.msra.mxu0 0.0
    %997 = vmatprep.subr.mxu0 0.0
    %998 = vmatpush1.msra.mxu0 0.0
    %999 = vmatprep.subr.mxu0 0.0
    %1000 = vmatpush1.msra.mxu0 %v973
    %1001 = vmatprep.subr.mxu0 0.0
    %1002 = vmatpush1.msra.mxu0 %v972
    %1003 = vmatprep.subr.mxu0 0.0
    %1004 = vmatpush1.msra.mxu0 %v971
    %1005 = vmatprep.subr.mxu0 0.0
    %1006 = vmatpush1.msra.mxu0 %v970
    %1007 = vmatprep.subr.mxu0 0.0
    %1008 = vmatpush1.msra.mxu0 %v969
    %1009 = vmatprep.subr.mxu0 0.0
    %1010 = vmatpush2.msra.mxu0 0.0
    %1011 = vmatprep.subr.mxu0 0.0
    %1012 = vmatpush2.msra.mxu0 0.0
    %1013 = vmatprep.subr.mxu0 0.0
    %1014 = vmatpush2.msra.mxu0 0.0
    %1015 = vmatprep.subr.mxu0 0.0
    %1016 = vmatpush2.msra.mxu0 0.0
    %1017 = vmatprep.subr.mxu0 0.0
    %1018 = vmatpush2.msra.mxu0 0.0
    %1019 = vmatprep.subr.mxu0 0.0
    %1020 = vmatpush2.msra.mxu0 0.0
    %1021 = vmatprep.subr.mxu0 0.0
    %1022 = vmatpush2.msra.mxu0 0.0
    %1023 = vmatprep.subr.mxu0 0.0
    %1024 = vmatpush2.msra.mxu0 0.0
    %1025 = vmatprep.subr.mxu0 0.0
    %1026 = vmatpush2.msra.mxu0 0.0
    %1027 = vmatprep.subr.mxu0 0.0
    %1028 = vmatpush2.msra.mxu0 0.0
    %1029 = vmatprep.subr.mxu0 0.0
    %1030 = vmatpush2.msra.mxu0 0.0
    %1031 = vmatprep.subr.mxu0 0.0
    %1032 = vmatpush2.msra.mxu0 0.0
    %1033 = vmatprep.subr.mxu0 0.0
    %1034 = vmatpush2.msra.mxu0 0.0
    %1035 = vmatprep.subr.mxu0 0.0
    %1036 = vmatpush2.msra.mxu0 0.0
    %1037 = vmatprep.subr.mxu0 0.0
    %1038 = vmatpush2.msra.mxu0 0.0
    %1039 = vmatprep.subr.mxu0 0.0
    %1040 = vmatpush2.msra.mxu0 0.0
    %1041 = vmatprep.mubr.f32.mxu0 0.0
    %1042 = vmatmul.mubr.f32.gmra.mxu0 %v975
    %v1043 = vpop.f32.mrf.mxu0
    %v1044 = vadd.f32 0.0, %v1043
    %v1045 = vpop.f32.mrf.mxu0
    %1046 = vdwg.mxu0
    %v1047 = vrot.slane %v1044, 4
    %v1048 = vadd.f32 %v1044, %v1047
    %v1049 = vrot.slane %v1048, 2
    %v1050 = vadd.f32 %v1048, %v1049
    %v1051 = vrot.slane %v1050, 1
    %v1052 = vadd.f32 %v1050, %v1051
    %v1053 = vmul.f32 %v1052, %v140
    %v1054 = vmul.f32 %v1044, %v1044
    %v1055 = vrot.slane %v1054, 4
    %v1056 = vadd.f32 %v1054, %v1055
    %v1057 = vrot.slane %v1056, 2
    %v1058 = vadd.f32 %v1056, %v1057
    %v1059 = vrot.slane %v1058, 1
    %v1060 = vadd.f32 %v1058, %v1059
    %v1061 = vmul.f32 %v1060, %v140
    %v1062 = vmul.f32 %v1053, %v1053
    %v1063 = vsub.f32 %v1061, %v1062
    %v1064 = vmax.f32 %v1063, 0.0
    %v1065 = vld [vmem:[#allocation7 + $0x8] sm:$0x1]
    %v1066 = vadd.f32 %v1064, 1e-05
    %v1067 = vrsqrt.pop %v1066
    %v1068 = vmul.f32 %v1065, %v1067
    %v1069 = vsub.f32 %v1044, %v1053
    %v1070 = vlaneseq
    %v1071 = vshrl.u32 %v1070, 7
    %v1072 = vsub.s32 0, %v1071
    %v1073 = vrot.slane %v1068, %v1072
    %v1074 = vmul.f32 %v1069, %v1073
    %v1075 = vld [vmem:[#allocation7 + $0x11] sm:$0x1]
    %v1076 = vlaneseq
    %v1077 = vshrl.u32 %v1076, 7
    %v1078 = vsub.s32 0, %v1077
    %v1079 = vrot.slane %v1075, %v1078
    %v1080 = vadd.f32 %v1074, %v1079
    %vm1081 = vcmp.ge.f32.partialorder %v1080, 0.0
    %v1082 = vmul.f32 %v1080, 0.01
    %v1083 = vsel %vm1081, %v1080, %v1082
    %v1084 = vadd.f32 %v1083, %v854
    %s1085 = scalar_lea.vmem [#allocation5], 360
    %v1086 = vld [vmem:[%s1085] sm:$0xff]
    %v1087 = vld [vmem:[%s1085 + $0x8] sm:$0xff]
    %v1088 = vld [vmem:[%s1085 + $0x10] sm:$0xff]
    %v1089 = vld [vmem:[%s1085 + $0x18] sm:$0xff]
    %v1090 = vld [vmem:[%s1085 + $0x20] sm:$0xff]
    %v1091 = vld [vmem:[#allocation7 + $0x12] sm:$0x1]
    %v1092 = vlaneseq
    %v1093 = vshrl.u32 %v1092, 7
    %v1094 = vsub.s32 0, %v1093
    %v1095 = vrot.slane %v1091, %v1094
    %v1097 = vsel %vm60, %v1084, 0
    %1099 = vmatprep.subr.mxu0 0.0
    %1100 = vmatpush1.msra.mxu0 0.0
    %1101 = vmatprep.subr.mxu0 0.0
    %1102 = vmatpush1.msra.mxu0 0.0
    %1103 = vmatprep.subr.mxu0 0.0
    %1104 = vmatpush1.msra.mxu0 0.0
    %1105 = vmatprep.subr.mxu0 0.0
    %1106 = vmatpush1.msra.mxu0 0.0
    %1107 = vmatprep.subr.mxu0 0.0
    %1108 = vmatpush1.msra.mxu0 0.0
    %1109 = vmatprep.subr.mxu0 0.0
    %1110 = vmatpush1.msra.mxu0 0.0
    %1111 = vmatprep.subr.mxu0 0.0
    %1112 = vmatpush1.msra.mxu0 0.0
    %1113 = vmatprep.subr.mxu0 0.0
    %1114 = vmatpush1.msra.mxu0 0.0
    %1115 = vmatprep.subr.mxu0 0.0
    %1116 = vmatpush1.msra.mxu0 0.0
    %1117 = vmatprep.subr.mxu0 0.0
    %1118 = vmatpush1.msra.mxu0 0.0
    %1119 = vmatprep.subr.mxu0 0.0
    %1120 = vmatpush1.msra.mxu0 0.0
    %1121 = vmatprep.subr.mxu0 0.0
    %1122 = vmatpush1.msra.mxu0 %v1090
    %1123 = vmatprep.subr.mxu0 0.0
    %1124 = vmatpush1.msra.mxu0 %v1089
    %1125 = vmatprep.subr.mxu0 0.0
    %1126 = vmatpush1.msra.mxu0 %v1088
    %1127 = vmatprep.subr.mxu0 0.0
    %1128 = vmatpush1.msra.mxu0 %v1087
    %1129 = vmatprep.subr.mxu0 0.0
    %1130 = vmatpush1.msra.mxu0 %v1086
    %1131 = vmatprep.subr.mxu0 0.0
    %1132 = vmatpush2.msra.mxu0 0.0
    %1133 = vmatprep.subr.mxu0 0.0
    %1134 = vmatpush2.msra.mxu0 0.0
    %1135 = vmatprep.subr.mxu0 0.0
    %1136 = vmatpush2.msra.mxu0 0.0
    %1137 = vmatprep.subr.mxu0 0.0
    %1138 = vmatpush2.msra.mxu0 0.0
    %1139 = vmatprep.subr.mxu0 0.0
    %1140 = vmatpush2.msra.mxu0 0.0
    %1141 = vmatprep.subr.mxu0 0.0
    %1142 = vmatpush2.msra.mxu0 0.0
    %1143 = vmatprep.subr.mxu0 0.0
    %1144 = vmatpush2.msra.mxu0 0.0
    %1145 = vmatprep.subr.mxu0 0.0
    %1146 = vmatpush2.msra.mxu0 0.0
    %1147 = vmatprep.subr.mxu0 0.0
    %1148 = vmatpush2.msra.mxu0 0.0
    %1149 = vmatprep.subr.mxu0 0.0
    %1150 = vmatpush2.msra.mxu0 0.0
    %1151 = vmatprep.subr.mxu0 0.0
    %1152 = vmatpush2.msra.mxu0 0.0
    %1153 = vmatprep.subr.mxu0 0.0
    %1154 = vmatpush2.msra.mxu0 0.0
    %1155 = vmatprep.subr.mxu0 0.0
    %1156 = vmatpush2.msra.mxu0 0.0
    %1157 = vmatprep.subr.mxu0 0.0
    %1158 = vmatpush2.msra.mxu0 0.0
    %1159 = vmatprep.subr.mxu0 0.0
    %1160 = vmatpush2.msra.mxu0 0.0
    %1161 = vmatprep.subr.mxu0 0.0
    %1162 = vmatpush2.msra.mxu0 0.0
    %1163 = vmatprep.mubr.f32.mxu0 0.0
    %1164 = vmatmul.mubr.f32.gmra.mxu0 %v1097
    %v1165 = vpop.f32.mrf.mxu0
    %v1166 = vadd.f32 %v1095, %v1165
    %v1167 = vpop.f32.mrf.mxu0
    %1168 = vdwg.mxu0
    %1169 = vst [vmem:[#allocation8] sm:$0xff] %v1166
    // Predicated region
    $region26: #{wave_resnet_forward.1} parent=1 // pred_check
      _
    $region27: #{wave_resnet_forward.1} parent=1 // pred_check_branch
      %1171 = sbr.rel (0) target = $region29
    $region28: #{wave_resnet_forward.1} parent=1 // pred_region
      %s1173 = ssub.s32 128, 128
      %1174 = vsyncadd [#allocation4], %s1173
      %s1176 = sshll.u32 [#allocation8], 4
      %s1177 = int_to_ptr.vmem [resolvable:$true] %s1176
      %1179 = dma.vmem_to_hbm [thread:$0]  %s1177, 128, %s3, [#allocation4]
    $region29: #{wave_resnet_forward.1} parent=1 // pred_fallthru
      _
    // Predicated region
    $region30: #{wave_resnet_forward.1} parent=1 // pred_check
      _
    $region31: #{wave_resnet_forward.1} parent=1 // pred_check_branch
      %1181 = sbr.rel (0) target = $region33
    $region32: #{wave_resnet_forward.1} parent=1 // pred_region
      %1182 = dma.done [#allocation4], 128
    $region33: #{wave_resnet_forward.1} parent=1 // pred_fallthru
      _
    %1183 = vsyncpa [#allocation3], 1
    %1184 = vsyncpa [#allocation6], 1
    %1185 = vsyncpa [#allocation4], 1

</llo_original>
